<compile_context>
chip_gen: v6e
topology: v6e:2x2x1
jax: 0.10.0
libtpu: 0.0.40
codegen_flags: <defaults>
</compile_context>

<pallas_src>
import jax
import jax.numpy as jnp
from jax.experimental import pallas as pl
from jax.experimental.pallas import tpu as pltpu

HIDDEN = 400        # fc1 / fc3 output width, fixed by the PyTorch module
HIDDEN_PAD = 512    # padded to a multiple of 128 (zero pad -> results unchanged)
ML_PAD = 128        # lane group holding mu || logvar
MLW = 2 * ML_PAD    # fused projection width: [mu|logvar|0 , logvar|0]


def _round_up(n, m):
    return ((n + m - 1) // m) * m


def _vae_fwd_kernel(x_ref, eps_ref,
                    w1_ref, b1_ref,
                    wml_ref, bml_ref,
                    w3_ref, b3_ref,
                    w4_ref, b4_ref,
                    recon_ref, ml_ref):
    # ---- encode (bf16 MXU inputs, f32 accumulation) ----
    x = x_ref[...].astype(jnp.bfloat16)                              # in-kernel cast
    h1 = jnp.dot(x, w1_ref[...], preferred_element_type=jnp.float32) + b1_ref[...]
    h1 = jnp.maximum(h1, 0.0)                                        # ReLU, f32 (TB, 512)

    # fused mu/logvar projection in f32:
    #   lanes [  0:128) = [mu, logvar, 0...]   -> stored as the 'ml' output
    #   lanes [128:256) = [logvar, 0...]       -> logvar pre-aligned with mu's lanes
    mlcat = jnp.dot(h1, wml_ref[...], preferred_element_type=jnp.float32) + bml_ref[...]
    ml = mlcat[:, :ML_PAD]
    lv_aligned = mlcat[:, ML_PAD:]

    # ---- reparameterize, fully lane-dense ----
    std = jnp.exp(0.5 * lv_aligned)          # lanes >= L are exp(0) = 1
    z = ml + eps_ref[...] * std              # eps zero past L; junk lanes are killed
                                             # by the zero rows [L:128) of w3 below
    # ---- decode ----
    h3 = jnp.dot(z.astype(jnp.bfloat16), w3_ref[...],
                 preferred_element_type=jnp.float32) + b3_ref[...]
    h3 = jnp.maximum(h3, 0.0)                                        # ReLU, f32 (TB, 512)
    logits = jnp.dot(h3.astype(jnp.bfloat16), w4_ref[...],
                     preferred_element_type=jnp.float32) + b4_ref[...]

    recon_ref[...] = jax.nn.sigmoid(logits)                          # f32 (TB, D_pad)
    ml_ref[...] = ml                                                 # f32 (TB, 128)


def pack_params(params, D, L):
    """Fuse/duplicate the mu/logvar weights, zero-pad to 128-multiples, cast dtypes."""
    assert 2 * L <= ML_PAD, "dimension_latent too large for one 128-lane group"
    bf16, f32 = jnp.bfloat16, jnp.float32
    D_pad = _round_up(D, 128)

    def pad_to(w, rows, cols):
        return jnp.pad(w, ((0, rows - w.shape[0]), (0, cols - w.shape[1])))

    w1 = pad_to(params["w1"], D_pad, HIDDEN_PAD).astype(bf16)             # (D_pad, 512)
    b1 = jnp.pad(params["b1"], (0, HIDDEN_PAD - HIDDEN)).reshape(1, HIDDEN_PAD).astype(f32)

    # fused projection with logvar duplicated into a second lane group so the
    # reparameterization needs no cross-lane movement; kept f32 for fidelity.
    blk_a = pad_to(jnp.concatenate([params["w21"], params["w22"]], axis=1),
                   HIDDEN, ML_PAD)                                        # [mu|logvar|0]
    blk_b = pad_to(params["w22"], HIDDEN, ML_PAD)                         # [logvar|0]
    w_ml = pad_to(jnp.concatenate([blk_a, blk_b], axis=1),
                  HIDDEN_PAD, MLW).astype(f32)                            # (512, 256)
    b_a = jnp.pad(jnp.concatenate([params["b21"], params["b22"]]), (0, ML_PAD - 2 * L))
    b_b = jnp.pad(params["b22"], (0, ML_PAD - L))
    b_ml = jnp.concatenate([b_a, b_b]).reshape(1, MLW).astype(f32)

    # decode weights; zero rows [L:128) of w3 absorb the padded z lanes.
    w3 = pad_to(params["w3"], ML_PAD, HIDDEN_PAD).astype(bf16)            # (128, 512)
    b3 = jnp.pad(params["b3"], (0, HIDDEN_PAD - HIDDEN)).reshape(1, HIDDEN_PAD).astype(f32)
    w4 = pad_to(params["w4"], HIDDEN_PAD, D_pad).astype(bf16)             # (512, D_pad)
    b4 = jnp.pad(params["b4"], (0, D_pad - D)).reshape(1, D_pad).astype(f32)

    return dict(w1=w1, b1=b1, w_ml=w_ml, b_ml=b_ml, w3=w3, b3=b3, w4=w4, b4=b4,
                D=D, D_pad=D_pad, L=L)


def vae_forward(x, eps, packed, *, tb=None):
    """x: (B,C,H,W) or (B,D) f32; eps: (B,L) standard normal; packed: pack_params output."""
    B = x.shape[0]
    D, D_pad, L = packed["D"], packed["D_pad"], packed["L"]
    x2d = x.reshape(B, -1).astype(jnp.float32)        # x.view(-1, size_cutting**2)
    assert x2d.shape[1] == D

    # batch tile: fill MXU rows at large B, sublane-aligned at small B
    if tb is None:
        tb = 256 if B >= 256 else _round_up(max(B, 1), 16)
    B_pad = _round_up(B, tb)

    x_pad = jnp.pad(x2d, ((0, B_pad - B), (0, D_pad - D)))
    eps_pad = jnp.pad(eps.astype(jnp.float32), ((0, B_pad - B), (0, ML_PAD - L)))

    operands = [x_pad, eps_pad,
                packed["w1"], packed["b1"], packed["w_ml"], packed["b_ml"],
                packed["w3"], packed["b3"], packed["w4"], packed["b4"]]

    row = lambda i: (i, 0)       # batch-tiled blocks
    rep = lambda i: (0, 0)       # weights/biases: constant block -> VMEM-resident

    in_specs = [
        pl.BlockSpec((tb, D_pad), row),
        pl.BlockSpec((tb, ML_PAD), row),
        pl.BlockSpec((D_pad, HIDDEN_PAD), rep),
        pl.BlockSpec((1, HIDDEN_PAD), rep),
        pl.BlockSpec((HIDDEN_PAD, MLW), rep),
        pl.BlockSpec((1, MLW), rep),
        pl.BlockSpec((ML_PAD, HIDDEN_PAD), rep),
        pl.BlockSpec((1, HIDDEN_PAD), rep),
        pl.BlockSpec((HIDDEN_PAD, D_pad), rep),
        pl.BlockSpec((1, D_pad), rep),
    ]
    out_specs = (pl.BlockSpec((tb, D_pad), row),
                 pl.BlockSpec((tb, ML_PAD), row))

    flops = 2 * B_pad * (D_pad * HIDDEN_PAD + HIDDEN_PAD * MLW
                         + ML_PAD * HIDDEN_PAD + HIDDEN_PAD * D_pad)
    transcendentals = B_pad * (ML_PAD + D_pad)
    bytes_accessed = (sum(int(op.size) * op.dtype.itemsize for op in operands)
                      + B_pad * (D_pad + ML_PAD) * 4)

    recon, ml = pl.pallas_call(
        _vae_fwd_kernel,
        grid=(B_pad // tb,),
        out_shape=(jax.ShapeDtypeStruct((B_pad, D_pad), jnp.float32),     # reconstruction
                   jax.ShapeDtypeStruct((B_pad, ML_PAD), jnp.float32)),   # mu || logvar
        in_specs=in_specs,
        out_specs=out_specs,
        compiler_params=pltpu.CompilerParams(dimension_semantics=("parallel",)),
        cost_estimate=pl.CostEstimate(flops=flops,
                                      transcendentals=transcendentals,
                                      bytes_accessed=bytes_accessed),
    )(*operands)

    recon = recon[:B, :D]
    mu = ml[:B, :L]
    logvar = ml[:B, L:2 * L]
    return recon, mu, logvar


def init_params(key, D, L):
    """Deterministic synthetic parameters; weights stored as (in, out), f32."""
    ks = jax.random.split(key, 10)
    scale = 0.05

    def w(k, i, o):
        return scale * jax.random.normal(k, (i, o), dtype=jnp.float32)

    def b(k, o):
        return scale * jax.random.normal(k, (o,), dtype=jnp.float32)

    return {
        "w1": w(ks[0], D, HIDDEN),  "b1": b(ks[1], HIDDEN),
        "w21": w(ks[2], HIDDEN, L), "b21": b(ks[3], L),
        "w22": w(ks[4], HIDDEN, L), "b22": b(ks[5], L),
        "w3": w(ks[6], L, HIDDEN),  "b3": b(ks[7], HIDDEN),
        "w4": w(ks[8], HIDDEN, D),  "b4": b(ks[9], D),
    }


def _reference(x, eps, params):
    """Pure-JAX f32 reference matching the PyTorch module's forward."""
    B = x.shape[0]
    x2d = x.reshape(B, -1).astype(jnp.float32)
    h1 = jax.nn.relu(x2d @ params["w1"] + params["b1"])
    mu = h1 @ params["w21"] + params["b21"]
    logvar = h1 @ params["w22"] + params["b22"]
    z = mu + eps * jnp.exp(0.5 * logvar)
    h3 = jax.nn.relu(z @ params["w3"] + params["b3"])
    recon = jax.nn.sigmoid(h3 @ params["w4"] + params["b4"])
    return recon, mu, logvar


if __name__ == "__main__":
    # small shapes consistent with the module: size_cutting=16, dimension_latent=32
    B, size_cutting, L = 2, 16, 32
    D = size_cutting * size_cutting

    key = jax.random.PRNGKey(0)
    k_x, k_eps, k_p = jax.random.split(key, 3)

    x = jax.random.normal(k_x, (B, 1, size_cutting, size_cutting), dtype=jnp.float32)
    # eps plays the role of torch.randn_like(std); supplied deterministically here.
    eps = jax.random.normal(k_eps, (B, L), dtype=jnp.float32)
    params = init_params(k_p, D, L)
    packed = pack_params(params, D, L)

    recon, mu, logvar = vae_forward(x, eps, packed)
    jax.block_until_ready((recon, mu, logvar))

    # sanity check vs pure-JAX f32 reference (tolerance covers bf16 matmul inputs)
    r_ref, m_ref, lv_ref = _reference(x, eps, params)
    assert recon.shape == (B, D) and mu.shape == (B, L) and logvar.shape == (B, L)
    assert jnp.allclose(mu, m_ref, atol=3e-2, rtol=3e-2), "mu mismatch"
    assert jnp.allclose(logvar, lv_ref, atol=3e-2, rtol=3e-2), "logvar mismatch"
    assert jnp.allclose(recon, r_ref, atol=3e-2, rtol=3e-2), "recon mismatch"

    print("KERNEL_OK")
</pallas_src>

<mosaic_0001>
module attributes {stable_mosaic.version = 11 : i64} {
  func.func @_vae_fwd_kernel(%arg0: i32, %arg1: memref<16x256xf32, #tpu.memory_space<vmem>>, %arg2: memref<16x128xf32, #tpu.memory_space<vmem>>, %arg3: memref<256x512xbf16, #tpu.memory_space<vmem>>, %arg4: memref<1x512xf32, #tpu.memory_space<vmem>>, %arg5: memref<512x256xf32, #tpu.memory_space<vmem>>, %arg6: memref<1x256xf32, #tpu.memory_space<vmem>>, %arg7: memref<128x512xbf16, #tpu.memory_space<vmem>>, %arg8: memref<1x512xf32, #tpu.memory_space<vmem>>, %arg9: memref<512x256xbf16, #tpu.memory_space<vmem>>, %arg10: memref<1x256xf32, #tpu.memory_space<vmem>>, %arg11: memref<16x256xf32, #tpu.memory_space<vmem>>, %arg12: memref<16x128xf32, #tpu.memory_space<vmem>>) attributes {dimension_semantics = [#tpu.dimension_semantics<parallel>], iteration_bounds = array<i64: 1>, scalar_prefetch = 0 : i64, scratch_operands = 0 : i64, tpu.core_type = #tpu.core_type<tc>, window_params = [{transform_indices = @transform_0, window_bounds = array<i64: 16, 256>}, {transform_indices = @transform_1, window_bounds = array<i64: 16, 128>}, {pipeline_mode = #tpu.pipeline_mode<synchronous>, transform_indices = @transform_2, window_bounds = array<i64: 256, 512>}, {pipeline_mode = #tpu.pipeline_mode<synchronous>, transform_indices = @transform_3, window_bounds = array<i64: 1, 512>}, {pipeline_mode = #tpu.pipeline_mode<synchronous>, transform_indices = @transform_4, window_bounds = array<i64: 512, 256>}, {pipeline_mode = #tpu.pipeline_mode<synchronous>, transform_indices = @transform_5, window_bounds = array<i64: 1, 256>}, {pipeline_mode = #tpu.pipeline_mode<synchronous>, transform_indices = @transform_6, window_bounds = array<i64: 128, 512>}, {pipeline_mode = #tpu.pipeline_mode<synchronous>, transform_indices = @transform_7, window_bounds = array<i64: 1, 512>}, {pipeline_mode = #tpu.pipeline_mode<synchronous>, transform_indices = @transform_8, window_bounds = array<i64: 512, 256>}, {pipeline_mode = #tpu.pipeline_mode<synchronous>, transform_indices = @transform_9, window_bounds = array<i64: 1, 256>}, {transform_indices = @transform_10, window_bounds = array<i64: 16, 256>}, {transform_indices = @transform_11, window_bounds = array<i64: 16, 128>}]} {
    %c0 = arith.constant 0 : index
    %c0_0 = arith.constant 0 : index
    %0 = vector.load %arg1[%c0, %c0_0] : memref<16x256xf32, #tpu.memory_space<vmem>>, vector<16x256xf32>
    %1 = arith.truncf %0 : vector<16x256xf32> to vector<16x256xbf16>
    %c0_1 = arith.constant 0 : index
    %c0_2 = arith.constant 0 : index
    %2 = vector.load %arg3[%c0_1, %c0_2] : memref<256x512xbf16, #tpu.memory_space<vmem>>, vector<256x512xbf16>
    %cst = arith.constant dense<0.000000e+00> : vector<16x512xf32>
    %3 = tpu.matmul %1, %2, %cst {dimension_numbers = #tpu.dot_dimension_numbers<[1], [0], [0], [1], [0, 0, 1, 1], [], []>} : vector<16x256xbf16>, vector<256x512xbf16>, vector<16x512xf32> -> vector<16x512xf32>
    %c0_3 = arith.constant 0 : index
    %c0_4 = arith.constant 0 : index
    %4 = vector.load %arg4[%c0_3, %c0_4] : memref<1x512xf32, #tpu.memory_space<vmem>>, vector<1x512xf32>
    %5 = vector.broadcast %4 : vector<1x512xf32> to vector<16x512xf32>
    %6 = arith.addf %3, %5 : vector<16x512xf32>
    %cst_5 = arith.constant 0.000000e+00 : f32
    %7 = vector.broadcast %cst_5 : f32 to vector<16x512xf32>
    %8 = arith.maximumf %6, %7 : vector<16x512xf32>
    %c0_6 = arith.constant 0 : index
    %c0_7 = arith.constant 0 : index
    %9 = vector.load %arg5[%c0_6, %c0_7] : memref<512x256xf32, #tpu.memory_space<vmem>>, vector<512x256xf32>
    %cst_8 = arith.constant dense<0.000000e+00> : vector<16x256xf32>
    %10 = tpu.matmul %8, %9, %cst_8 {dimension_numbers = #tpu.dot_dimension_numbers<[1], [0], [0], [1], [0, 0, 1, 1], [], []>} : vector<16x512xf32>, vector<512x256xf32>, vector<16x256xf32> -> vector<16x256xf32>
    %c0_9 = arith.constant 0 : index
    %c0_10 = arith.constant 0 : index
    %11 = vector.load %arg6[%c0_9, %c0_10] : memref<1x256xf32, #tpu.memory_space<vmem>>, vector<1x256xf32>
    %12 = vector.broadcast %11 : vector<1x256xf32> to vector<16x256xf32>
    %13 = arith.addf %10, %12 : vector<16x256xf32>
    %14 = vector.extract_strided_slice %13 {offsets = [0, 0], sizes = [16, 128], strides = [1, 1]} : vector<16x256xf32> to vector<16x128xf32>
    %15 = vector.extract_strided_slice %13 {offsets = [0, 128], sizes = [16, 128], strides = [1, 1]} : vector<16x256xf32> to vector<16x128xf32>
    %cst_11 = arith.constant 5.000000e-01 : f32
    %16 = vector.broadcast %cst_11 : f32 to vector<16x128xf32>
    %17 = arith.mulf %16, %15 : vector<16x128xf32>
    %18 = math.exp %17 : vector<16x128xf32>
    %c0_12 = arith.constant 0 : index
    %c0_13 = arith.constant 0 : index
    %19 = vector.load %arg2[%c0_12, %c0_13] : memref<16x128xf32, #tpu.memory_space<vmem>>, vector<16x128xf32>
    %20 = arith.mulf %19, %18 : vector<16x128xf32>
    %21 = arith.addf %14, %20 : vector<16x128xf32>
    %22 = arith.truncf %21 : vector<16x128xf32> to vector<16x128xbf16>
    %c0_14 = arith.constant 0 : index
    %c0_15 = arith.constant 0 : index
    %23 = vector.load %arg7[%c0_14, %c0_15] : memref<128x512xbf16, #tpu.memory_space<vmem>>, vector<128x512xbf16>
    %cst_16 = arith.constant dense<0.000000e+00> : vector<16x512xf32>
    %24 = tpu.matmul %22, %23, %cst_16 {dimension_numbers = #tpu.dot_dimension_numbers<[1], [0], [0], [1], [0, 0, 1, 1], [], []>} : vector<16x128xbf16>, vector<128x512xbf16>, vector<16x512xf32> -> vector<16x512xf32>
    %c0_17 = arith.constant 0 : index
    %c0_18 = arith.constant 0 : index
    %25 = vector.load %arg8[%c0_17, %c0_18] : memref<1x512xf32, #tpu.memory_space<vmem>>, vector<1x512xf32>
    %26 = vector.broadcast %25 : vector<1x512xf32> to vector<16x512xf32>
    %27 = arith.addf %24, %26 : vector<16x512xf32>
    %cst_19 = arith.constant 0.000000e+00 : f32
    %28 = vector.broadcast %cst_19 : f32 to vector<16x512xf32>
    %29 = arith.maximumf %27, %28 : vector<16x512xf32>
    %30 = arith.truncf %29 : vector<16x512xf32> to vector<16x512xbf16>
    %c0_20 = arith.constant 0 : index
    %c0_21 = arith.constant 0 : index
    %31 = vector.load %arg9[%c0_20, %c0_21] : memref<512x256xbf16, #tpu.memory_space<vmem>>, vector<512x256xbf16>
    %cst_22 = arith.constant dense<0.000000e+00> : vector<16x256xf32>
    %32 = tpu.matmul %30, %31, %cst_22 {dimension_numbers = #tpu.dot_dimension_numbers<[1], [0], [0], [1], [0, 0, 1, 1], [], []>} : vector<16x512xbf16>, vector<512x256xbf16>, vector<16x256xf32> -> vector<16x256xf32>
    %c0_23 = arith.constant 0 : index
    %c0_24 = arith.constant 0 : index
    %33 = vector.load %arg10[%c0_23, %c0_24] : memref<1x256xf32, #tpu.memory_space<vmem>>, vector<1x256xf32>
    %34 = vector.broadcast %33 : vector<1x256xf32> to vector<16x256xf32>
    %35 = arith.addf %32, %34 : vector<16x256xf32>
    %36 = arith.negf %35 : vector<16x256xf32>
    %37 = math.exp %36 : vector<16x256xf32>
    %cst_25 = arith.constant 1.000000e+00 : f32
    %38 = vector.broadcast %cst_25 : f32 to vector<16x256xf32>
    %39 = arith.addf %38, %37 : vector<16x256xf32>
    %40 = arith.divf %38, %39 : vector<16x256xf32>
    %c0_26 = arith.constant 0 : index
    %c0_27 = arith.constant 0 : index
    %41 = vector.load %arg11[%c0_26, %c0_27] : memref<16x256xf32, #tpu.memory_space<vmem>>, vector<16x256xf32>
    tpu.vector_store %arg11[%c0_26, %c0_27], %40 {strides = array<i32>} : memref<16x256xf32, #tpu.memory_space<vmem>>, vector<16x256xf32>,
    %c0_28 = arith.constant 0 : index
    %c0_29 = arith.constant 0 : index
    %42 = vector.load %arg12[%c0_28, %c0_29] : memref<16x128xf32, #tpu.memory_space<vmem>>, vector<16x128xf32>
    tpu.vector_store %arg12[%c0_28, %c0_29], %14 {strides = array<i32>} : memref<16x128xf32, #tpu.memory_space<vmem>>, vector<16x128xf32>,
    return
  }
  func.func @transform_0(%arg0: i32) -> (i32, i32) {
    %c0_i32 = arith.constant 0 : i32
    %c0_i32_0 = arith.constant 0 : i32
    return %arg0, %c0_i32 : i32, i32
  }
  func.func @transform_1(%arg0: i32) -> (i32, i32) {
    %c0_i32 = arith.constant 0 : i32
    %c0_i32_0 = arith.constant 0 : i32
    return %arg0, %c0_i32 : i32, i32
  }
  func.func @transform_2(%arg0: i32) -> (i32, i32) {
    %c0_i32 = arith.constant 0 : i32
    %c0_i32_0 = arith.constant 0 : i32
    %c0_i32_1 = arith.constant 0 : i32
    return %c0_i32, %c0_i32_0 : i32, i32
  }
  func.func @transform_3(%arg0: i32) -> (i32, i32) {
    %c0_i32 = arith.constant 0 : i32
    %c0_i32_0 = arith.constant 0 : i32
    %c0_i32_1 = arith.constant 0 : i32
    return %c0_i32, %c0_i32_0 : i32, i32
  }
  func.func @transform_4(%arg0: i32) -> (i32, i32) {
    %c0_i32 = arith.constant 0 : i32
    %c0_i32_0 = arith.constant 0 : i32
    %c0_i32_1 = arith.constant 0 : i32
    return %c0_i32, %c0_i32_0 : i32, i32
  }
  func.func @transform_5(%arg0: i32) -> (i32, i32) {
    %c0_i32 = arith.constant 0 : i32
    %c0_i32_0 = arith.constant 0 : i32
    %c0_i32_1 = arith.constant 0 : i32
    return %c0_i32, %c0_i32_0 : i32, i32
  }
  func.func @transform_6(%arg0: i32) -> (i32, i32) {
    %c0_i32 = arith.constant 0 : i32
    %c0_i32_0 = arith.constant 0 : i32
    %c0_i32_1 = arith.constant 0 : i32
    return %c0_i32, %c0_i32_0 : i32, i32
  }
  func.func @transform_7(%arg0: i32) -> (i32, i32) {
    %c0_i32 = arith.constant 0 : i32
    %c0_i32_0 = arith.constant 0 : i32
    %c0_i32_1 = arith.constant 0 : i32
    return %c0_i32, %c0_i32_0 : i32, i32
  }
  func.func @transform_8(%arg0: i32) -> (i32, i32) {
    %c0_i32 = arith.constant 0 : i32
    %c0_i32_0 = arith.constant 0 : i32
    %c0_i32_1 = arith.constant 0 : i32
    return %c0_i32, %c0_i32_0 : i32, i32
  }
  func.func @transform_9(%arg0: i32) -> (i32, i32) {
    %c0_i32 = arith.constant 0 : i32
    %c0_i32_0 = arith.constant 0 : i32
    %c0_i32_1 = arith.constant 0 : i32
    return %c0_i32, %c0_i32_0 : i32, i32
  }
  func.func @transform_10(%arg0: i32) -> (i32, i32) {
    %c0_i32 = arith.constant 0 : i32
    %c0_i32_0 = arith.constant 0 : i32
    return %arg0, %c0_i32 : i32, i32
  }
  func.func @transform_11(%arg0: i32) -> (i32, i32) {
    %c0_i32 = arith.constant 0 : i32
    %c0_i32_0 = arith.constant 0 : i32
    return %arg0, %c0_i32 : i32, i32
  }
}

</mosaic_0001>

<llo_original>
// kernel: tpu_custom_call.1
$region0: #{tpu_custom_call.1}
  #allocation0 [shape = 'u32[]', space=smem, size = 0x4, offset = 0x4, fixed_abs, tag = 'smem constant byte address 0x4 - core index']
  #allocation1 [shape = 'u32[144,128]{1,0:T(1,128)}', space=vmem, size = 0x12000, scoped, tag = 'internal scratch']
  %s0 = inlined_call_operand.hbm [shape: f32[16,256], index: 0, kind: input, shape index: {}]
  %s1 = inlined_call_operand.hbm [shape: f32[16,128], index: 1, kind: input, shape index: {}]
  %s2 = inlined_call_operand.hbm [shape: bf16[256,512], index: 2, kind: input, shape index: {}]
  %s3 = inlined_call_operand.vmem [shape: f32[1,512], index: 3, kind: input, shape index: {}]
  %s4 = inlined_call_operand.hbm [shape: f32[512,256], index: 4, kind: input, shape index: {}]
  %s5 = inlined_call_operand.hbm [shape: f32[1,256], index: 5, kind: input, shape index: {}]
  %s6 = inlined_call_operand.hbm [shape: bf16[128,512], index: 6, kind: input, shape index: {}]
  %s7 = inlined_call_operand.vmem [shape: f32[1,512], index: 7, kind: input, shape index: {}]
  %s8 = inlined_call_operand.hbm [shape: bf16[512,256], index: 8, kind: input, shape index: {}]
  %s9 = inlined_call_operand.vmem [shape: f32[1,256], index: 9, kind: input, shape index: {}]
  %s10 = inlined_call_operand.hbm [shape: f32[16,256], index: 10, kind: output, shape index: {0}]
  %s11 = inlined_call_operand.hbm [shape: f32[16,128], index: 11, kind: output, shape index: {1}]
  %12 = xla_tuple %s10, %s11
  %s13 = sld [smem:[#allocation0]]
  $region86: #{tpu_custom_call.1} parent=0
    _
  %s15 = ssub.s32 1, %s13
  %s16 = scalar_select 0, %s15, %s13
  $region1: #{tpu_custom_call.1} parent=0
    #allocation2 [shape = 'u8[16384]{0}', space=vmem, size = 0x4000, scoped, tag = 'input window, operand 0, single buffered']
    #allocation3 [shape = 's32[1]{0}', space=sflag, size = 0x4, scoped, tag = 'scoped memory for tpu_custom_call.1']
    #allocation4 [shape = 's32[1]{0}', space=sflag, size = 0x4, scoped, tag = 'scoped memory for tpu_custom_call.1']
    #allocation5 [shape = 'u8[8192]{0}', space=vmem, size = 0x2000, scoped, tag = 'input window, operand 1, single buffered']
    #allocation6 [shape = 's32[1]{0}', space=sflag, size = 0x4, scoped, tag = 'scoped memory for tpu_custom_call.1']
    #allocation7 [shape = 'u8[262144]{0}', space=vmem, size = 0x40000, scoped, tag = 'input window, operand 2, single buffered']
    #allocation8 [shape = 'u8[524288]{0}', space=vmem, size = 0x80000, scoped, tag = 'input window, operand 4, single buffered']
    #allocation9 [shape = 's32[1]{0}', space=sflag, size = 0x4, scoped, tag = 'scoped memory for tpu_custom_call.1']
    #allocation10 [shape = 'u8[1024]{0}', space=vmem, size = 0x400, scoped, tag = 'input window, operand 5, single buffered']
    #allocation11 [shape = 'u8[131072]{0}', space=vmem, size = 0x20000, scoped, tag = 'input window, operand 6, single buffered']
    #allocation12 [shape = 's32[1]{0}', space=sflag, size = 0x4, scoped, tag = 'scoped memory for tpu_custom_call.1']
    #allocation13 [shape = 'u8[262144]{0}', space=vmem, size = 0x40000, scoped, tag = 'input window, operand 8, single buffered']
    #allocation14 [shape = 'u8[16384]{0}', space=vmem, size = 0x4000, scoped, tag = 'output window, operand 0, single buffered']
    #allocation15 [shape = 'u8[8192]{0}', space=vmem, size = 0x2000, scoped, tag = 'output window, operand 1, single buffered']
    #allocation16 [shape = 's32[1]{0}', space=sflag, size = 0x4, scoped, tag = 'scoped memory for tpu_custom_call.1']
    %17 = vsyncpa [#allocation3], 0
    %18 = vsyncpa [#allocation6], 0
    %19 = vsyncpa [#allocation9], 0
    %20 = vsyncpa [#allocation12], 0
    %21 = vsyncpa [#allocation4], 0
    %22 = vsyncpa [#allocation16], 0
    // Predicated region
    $region2: #{tpu_custom_call.1} parent=1 // pred_check
      _
    $region3: #{tpu_custom_call.1} parent=1 // pred_check_branch
      %24 = sbr.rel (0) target = $region5
    $region4: #{tpu_custom_call.1} parent=1 // pred_region
      %s26 = ssub.s32 512, 512
      %27 = vsyncadd [#allocation3], %s26
      %s28 = sshll.u32 [#allocation2], 4
      %s29 = int_to_ptr.vmem [resolvable:$true] %s28
      %34 = dma.hbm_to_vmem [thread:$0]  %s0, 512, %s29, [#allocation3], 256, 256, 16
    $region5: #{tpu_custom_call.1} parent=1 // pred_fallthru
      _
    // Predicated region
    $region6: #{tpu_custom_call.1} parent=1 // pred_check
      _
    $region7: #{tpu_custom_call.1} parent=1 // pred_check_branch
      %36 = sbr.rel (0) target = $region9
    $region8: #{tpu_custom_call.1} parent=1 // pred_region
      %s38 = ssub.s32 256, 256
      %39 = vsyncadd [#allocation6], %s38
      %s40 = sshll.u32 [#allocation5], 4
      %s41 = int_to_ptr.vmem [resolvable:$true] %s40
      %46 = dma.hbm_to_vmem [thread:$0]  %s1, 256, %s41, [#allocation6], 128, 128, 8
    $region9: #{tpu_custom_call.1} parent=1 // pred_fallthru
      _
    // Predicated region
    $region10: #{tpu_custom_call.1} parent=1 // pred_check
      _
    $region11: #{tpu_custom_call.1} parent=1 // pred_check_branch
      %48 = sbr.rel (0) target = $region13
    $region12: #{tpu_custom_call.1} parent=1 // pred_region
      %s50 = ssub.s32 8192, 8192
      %51 = vsyncadd [#allocation6], %s50
      %s52 = sshll.u32 [#allocation7], 4
      %s53 = int_to_ptr.vmem [resolvable:$true] %s52
      %58 = dma.hbm_to_vmem [thread:$0]  %s2, 8192, %s53, [#allocation6], 256, 256, 16
    $region13: #{tpu_custom_call.1} parent=1 // pred_fallthru
      _
    // Predicated region
    $region14: #{tpu_custom_call.1} parent=1 // pred_check
      _
    $region15: #{tpu_custom_call.1} parent=1 // pred_check_branch
      %60 = sbr.rel (0) target = $region17
    $region16: #{tpu_custom_call.1} parent=1 // pred_region
      _
    $region17: #{tpu_custom_call.1} parent=1 // pred_fallthru
      _
    // Predicated region
    $region18: #{tpu_custom_call.1} parent=1 // pred_check
      _
    $region19: #{tpu_custom_call.1} parent=1 // pred_check_branch
      %62 = sbr.rel (0) target = $region21
    $region20: #{tpu_custom_call.1} parent=1 // pred_region
      %s64 = ssub.s32 16384, 16384
      %65 = vsyncadd [#allocation9], %s64
      %s66 = sshll.u32 [#allocation8], 4
      %s67 = int_to_ptr.vmem [resolvable:$true] %s66
      %72 = dma.hbm_to_vmem [thread:$0]  %s4, 16384, %s67, [#allocation9], 256, 256, 16
    $region21: #{tpu_custom_call.1} parent=1 // pred_fallthru
      _
    // Predicated region
    $region22: #{tpu_custom_call.1} parent=1 // pred_check
      _
    $region23: #{tpu_custom_call.1} parent=1 // pred_check_branch
      %74 = sbr.rel (0) target = $region25
    $region24: #{tpu_custom_call.1} parent=1 // pred_region
      %s76 = ssub.s32 32, 32
      %77 = vsyncadd [#allocation9], %s76
      %s79 = sshll.u32 [#allocation10], 4
      %s80 = int_to_ptr.vmem [resolvable:$true] %s79
      %82 = dma.hbm_to_vmem [thread:$0]  %s5, 32, %s80, [#allocation9]
    $region25: #{tpu_custom_call.1} parent=1 // pred_fallthru
      _
    // Predicated region
    $region26: #{tpu_custom_call.1} parent=1 // pred_check
      _
    $region27: #{tpu_custom_call.1} parent=1 // pred_check_branch
      %84 = sbr.rel (0) target = $region29
    $region28: #{tpu_custom_call.1} parent=1 // pred_region
      %s86 = ssub.s32 4096, 4096
      %87 = vsyncadd [#allocation12], %s86
      %s88 = sshll.u32 [#allocation11], 4
      %s89 = int_to_ptr.vmem [resolvable:$true] %s88
      %94 = dma.hbm_to_vmem [thread:$0]  %s6, 4096, %s89, [#allocation12], 256, 256, 16
    $region29: #{tpu_custom_call.1} parent=1 // pred_fallthru
      _
    // Predicated region
    $region30: #{tpu_custom_call.1} parent=1 // pred_check
      _
    $region31: #{tpu_custom_call.1} parent=1 // pred_check_branch
      %96 = sbr.rel (0) target = $region33
    $region32: #{tpu_custom_call.1} parent=1 // pred_region
      _
    $region33: #{tpu_custom_call.1} parent=1 // pred_fallthru
      _
    // Predicated region
    $region34: #{tpu_custom_call.1} parent=1 // pred_check
      _
    $region35: #{tpu_custom_call.1} parent=1 // pred_check_branch
      %98 = sbr.rel (0) target = $region37
    $region36: #{tpu_custom_call.1} parent=1 // pred_region
      %s100 = ssub.s32 8192, 8192
      %101 = vsyncadd [#allocation12], %s100
      %s102 = sshll.u32 [#allocation13], 4
      %s103 = int_to_ptr.vmem [resolvable:$true] %s102
      %108 = dma.hbm_to_vmem [thread:$0]  %s8, 8192, %s103, [#allocation12], 128, 128, 8
    $region37: #{tpu_custom_call.1} parent=1 // pred_fallthru
      _
    // Predicated region
    $region38: #{tpu_custom_call.1} parent=1 // pred_check
      _
    $region39: #{tpu_custom_call.1} parent=1 // pred_check_branch
      %110 = sbr.rel (0) target = $region41
    $region40: #{tpu_custom_call.1} parent=1 // pred_region
      _
    $region41: #{tpu_custom_call.1} parent=1 // pred_fallthru
      _
    // Predicated region
    $region42: #{tpu_custom_call.1} parent=1 // pred_check
      _
    $region43: #{tpu_custom_call.1} parent=1 // pred_check_branch
      %112 = sbr.rel (0) target = $region45
    $region44: #{tpu_custom_call.1} parent=1 // pred_region
      %113 = dma.done [#allocation3], 512
    $region45: #{tpu_custom_call.1} parent=1 // pred_fallthru
      _
    // Predicated region
    $region46: #{tpu_custom_call.1} parent=1 // pred_check
      _
    $region47: #{tpu_custom_call.1} parent=1 // pred_check_branch
      %115 = sbr.rel (0) target = $region49
    $region48: #{tpu_custom_call.1} parent=1 // pred_region
      %116 = dma.done [#allocation6], 256
    $region49: #{tpu_custom_call.1} parent=1 // pred_fallthru
      _
    // Predicated region
    $region50: #{tpu_custom_call.1} parent=1 // pred_check
      _
    $region51: #{tpu_custom_call.1} parent=1 // pred_check_branch
      %118 = sbr.rel (0) target = $region53
    $region52: #{tpu_custom_call.1} parent=1 // pred_region
      %119 = dma.done [#allocation6], 8192
    $region53: #{tpu_custom_call.1} parent=1 // pred_fallthru
      _
    // Predicated region
    $region54: #{tpu_custom_call.1} parent=1 // pred_check
      _
    $region55: #{tpu_custom_call.1} parent=1 // pred_check_branch
      %121 = sbr.rel (0) target = $region57
    $region56: #{tpu_custom_call.1} parent=1 // pred_region
      %122 = dma.done [#allocation9], 16384
    $region57: #{tpu_custom_call.1} parent=1 // pred_fallthru
      _
    // Predicated region
    $region58: #{tpu_custom_call.1} parent=1 // pred_check
      _
    $region59: #{tpu_custom_call.1} parent=1 // pred_check_branch
      %124 = sbr.rel (0) target = $region61
    $region60: #{tpu_custom_call.1} parent=1 // pred_region
      %125 = dma.done [#allocation9], 32
    $region61: #{tpu_custom_call.1} parent=1 // pred_fallthru
      _
    // Predicated region
    $region62: #{tpu_custom_call.1} parent=1 // pred_check
      _
    $region63: #{tpu_custom_call.1} parent=1 // pred_check_branch
      %127 = sbr.rel (0) target = $region65
    $region64: #{tpu_custom_call.1} parent=1 // pred_region
      %128 = dma.done [#allocation12], 4096
    $region65: #{tpu_custom_call.1} parent=1 // pred_fallthru
      _
    // Predicated region
    $region66: #{tpu_custom_call.1} parent=1 // pred_check
      _
    $region67: #{tpu_custom_call.1} parent=1 // pred_check_branch
      %130 = sbr.rel (0) target = $region69
    $region68: #{tpu_custom_call.1} parent=1 // pred_region
      %131 = dma.done [#allocation12], 8192
    $region69: #{tpu_custom_call.1} parent=1 // pred_fallthru
      _
    %v133 = vld [vmem:[#allocation2] sm:$0xff]
    %v134 = vld [vmem:[#allocation2 + $0x8] sm:$0xff]
    %v135 = vld [vmem:[#allocation2 + $0x10] sm:$0xff]
    %v136 = vld [vmem:[#allocation2 + $0x18] sm:$0xff]
    %v137 = vpack.c.bf16 %v135, %v133
    %v138 = vpack.c.bf16 %v136, %v134
    %v139 = vld [vmem:[#allocation7] sm:$0xff]
    %v140 = vld [vmem:[#allocation7 + $0x8] sm:$0xff]
    %v141 = vld [vmem:[#allocation7 + $0x10] sm:$0xff]
    %v142 = vld [vmem:[#allocation7 + $0x18] sm:$0xff]
    %v143 = vld [vmem:[#allocation7 + $0x20] sm:$0xff]
    %v144 = vld [vmem:[#allocation7 + $0x28] sm:$0xff]
    %v145 = vld [vmem:[#allocation7 + $0x30] sm:$0xff]
    %v146 = vld [vmem:[#allocation7 + $0x38] sm:$0xff]
    %v147 = vld [vmem:[#allocation7 + $0x40] sm:$0xff]
    %v148 = vld [vmem:[#allocation7 + $0x48] sm:$0xff]
    %v149 = vld [vmem:[#allocation7 + $0x50] sm:$0xff]
    %v150 = vld [vmem:[#allocation7 + $0x58] sm:$0xff]
    %v151 = vld [vmem:[#allocation7 + $0x60] sm:$0xff]
    %v152 = vld [vmem:[#allocation7 + $0x68] sm:$0xff]
    %v153 = vld [vmem:[#allocation7 + $0x70] sm:$0xff]
    %v154 = vld [vmem:[#allocation7 + $0x78] sm:$0xff]
    %v155 = vld [vmem:[#allocation7 + $0x80] sm:$0xff]
    %v156 = vld [vmem:[#allocation7 + $0x88] sm:$0xff]
    %v157 = vld [vmem:[#allocation7 + $0x90] sm:$0xff]
    %v158 = vld [vmem:[#allocation7 + $0x98] sm:$0xff]
    %v159 = vld [vmem:[#allocation7 + $0xa0] sm:$0xff]
    %v160 = vld [vmem:[#allocation7 + $0xa8] sm:$0xff]
    %v161 = vld [vmem:[#allocation7 + $0xb0] sm:$0xff]
    %v162 = vld [vmem:[#allocation7 + $0xb8] sm:$0xff]
    %v163 = vld [vmem:[#allocation7 + $0xc0] sm:$0xff]
    %v164 = vld [vmem:[#allocation7 + $0xc8] sm:$0xff]
    %v165 = vld [vmem:[#allocation7 + $0xd0] sm:$0xff]
    %v166 = vld [vmem:[#allocation7 + $0xd8] sm:$0xff]
    %v167 = vld [vmem:[#allocation7 + $0xe0] sm:$0xff]
    %v168 = vld [vmem:[#allocation7 + $0xe8] sm:$0xff]
    %v169 = vld [vmem:[#allocation7 + $0xf0] sm:$0xff]
    %v170 = vld [vmem:[#allocation7 + $0xf8] sm:$0xff]
    %v171 = vld [vmem:[#allocation7 + $0x100] sm:$0xff]
    %v172 = vld [vmem:[#allocation7 + $0x108] sm:$0xff]
    %v173 = vld [vmem:[#allocation7 + $0x110] sm:$0xff]
    %v174 = vld [vmem:[#allocation7 + $0x118] sm:$0xff]
    %v175 = vld [vmem:[#allocation7 + $0x120] sm:$0xff]
    %v176 = vld [vmem:[#allocation7 + $0x128] sm:$0xff]
    %v177 = vld [vmem:[#allocation7 + $0x130] sm:$0xff]
    %v178 = vld [vmem:[#allocation7 + $0x138] sm:$0xff]
    %v179 = vld [vmem:[#allocation7 + $0x140] sm:$0xff]
    %v180 = vld [vmem:[#allocation7 + $0x148] sm:$0xff]
    %v181 = vld [vmem:[#allocation7 + $0x150] sm:$0xff]
    %v182 = vld [vmem:[#allocation7 + $0x158] sm:$0xff]
    %v183 = vld [vmem:[#allocation7 + $0x160] sm:$0xff]
    %v184 = vld [vmem:[#allocation7 + $0x168] sm:$0xff]
    %v185 = vld [vmem:[#allocation7 + $0x170] sm:$0xff]
    %v186 = vld [vmem:[#allocation7 + $0x178] sm:$0xff]
    %v187 = vld [vmem:[#allocation7 + $0x180] sm:$0xff]
    %v188 = vld [vmem:[#allocation7 + $0x188] sm:$0xff]
    %v189 = vld [vmem:[#allocation7 + $0x190] sm:$0xff]
    %v190 = vld [vmem:[#allocation7 + $0x198] sm:$0xff]
    %v191 = vld [vmem:[#allocation7 + $0x1a0] sm:$0xff]
    %v192 = vld [vmem:[#allocation7 + $0x1a8] sm:$0xff]
    %v193 = vld [vmem:[#allocation7 + $0x1b0] sm:$0xff]
    %v194 = vld [vmem:[#allocation7 + $0x1b8] sm:$0xff]
    %v195 = vld [vmem:[#allocation7 + $0x1c0] sm:$0xff]
    %v196 = vld [vmem:[#allocation7 + $0x1c8] sm:$0xff]
    %v197 = vld [vmem:[#allocation7 + $0x1d0] sm:$0xff]
    %v198 = vld [vmem:[#allocation7 + $0x1d8] sm:$0xff]
    %v199 = vld [vmem:[#allocation7 + $0x1e0] sm:$0xff]
    %v200 = vld [vmem:[#allocation7 + $0x1e8] sm:$0xff]
    %v201 = vld [vmem:[#allocation7 + $0x1f0] sm:$0xff]
    %v202 = vld [vmem:[#allocation7 + $0x1f8] sm:$0xff]
    %v203 = vld [vmem:[%s3] sm:$0xf]
    %v205 = vlaneseq
    %v206 = vshrl.u32 %v205, 7
    %v207 = vsub.s32 0, %v206
    %v208 = vrot.slane %v203, %v207
    %v209 = vlaneseq
    %v210 = vshrl.u32 %v209, 7
    %v211 = vsub.s32 1, %v210
    %v212 = vrot.slane %v203, %v211
    %v213 = vlaneseq
    %v214 = vshrl.u32 %v213, 7
    %v215 = vsub.s32 2, %v214
    %v216 = vrot.slane %v203, %v215
    %v217 = vlaneseq
    %v218 = vshrl.u32 %v217, 7
    %v219 = vsub.s32 3, %v218
    %v220 = vrot.slane %v203, %v219
    %v289 = vunpack.c.l.b16 %v139
    %v290 = vunpack.c.h.b16 %v139
    %v291 = vunpack.c.l.b16 %v140
    %v292 = vunpack.c.h.b16 %v140
    %v293 = vunpack.c.l.b16 %v141
    %v294 = vunpack.c.h.b16 %v141
    %v295 = vunpack.c.l.b16 %v142
    %v296 = vunpack.c.h.b16 %v142
    %v297 = vunpack.c.l.b16 %v143
    %v298 = vunpack.c.h.b16 %v143
    %v299 = vunpack.c.l.b16 %v144
    %v300 = vunpack.c.h.b16 %v144
    %v301 = vunpack.c.l.b16 %v145
    %v302 = vunpack.c.h.b16 %v145
    %v303 = vunpack.c.l.b16 %v146
    %v304 = vunpack.c.h.b16 %v146
    %v305 = vunpack.c.l.b16 %v147
    %v306 = vunpack.c.h.b16 %v147
    %v307 = vunpack.c.l.b16 %v148
    %v308 = vunpack.c.h.b16 %v148
    %v309 = vunpack.c.l.b16 %v149
    %v310 = vunpack.c.h.b16 %v149
    %v311 = vunpack.c.l.b16 %v150
    %v312 = vunpack.c.h.b16 %v150
    %v313 = vunpack.c.l.b16 %v151
    %v314 = vunpack.c.h.b16 %v151
    %v315 = vunpack.c.l.b16 %v152
    %v316 = vunpack.c.h.b16 %v152
    %v317 = vunpack.c.l.b16 %v153
    %v318 = vunpack.c.h.b16 %v153
    %v319 = vunpack.c.l.b16 %v154
    %v320 = vunpack.c.h.b16 %v154
    %v321 = vunpack.c.l.b16 %v155
    %v322 = vunpack.c.h.b16 %v155
    %v323 = vunpack.c.l.b16 %v156
    %v324 = vunpack.c.h.b16 %v156
    %v325 = vunpack.c.l.b16 %v157
    %v326 = vunpack.c.h.b16 %v157
    %v327 = vunpack.c.l.b16 %v158
    %v328 = vunpack.c.h.b16 %v158
    %v329 = vunpack.c.l.b16 %v159
    %v330 = vunpack.c.h.b16 %v159
    %v331 = vunpack.c.l.b16 %v160
    %v332 = vunpack.c.h.b16 %v160
    %v333 = vunpack.c.l.b16 %v161
    %v334 = vunpack.c.h.b16 %v161
    %v335 = vunpack.c.l.b16 %v162
    %v336 = vunpack.c.h.b16 %v162
    %v337 = vunpack.c.l.b16 %v163
    %v338 = vunpack.c.h.b16 %v163
    %v339 = vunpack.c.l.b16 %v164
    %v340 = vunpack.c.h.b16 %v164
    %v341 = vunpack.c.l.b16 %v165
    %v342 = vunpack.c.h.b16 %v165
    %v343 = vunpack.c.l.b16 %v166
    %v344 = vunpack.c.h.b16 %v166
    %v345 = vunpack.c.l.b16 %v167
    %v346 = vunpack.c.h.b16 %v167
    %v347 = vunpack.c.l.b16 %v168
    %v348 = vunpack.c.h.b16 %v168
    %v349 = vunpack.c.l.b16 %v169
    %v350 = vunpack.c.h.b16 %v169
    %v351 = vunpack.c.l.b16 %v170
    %v352 = vunpack.c.h.b16 %v170
    %v353 = vunpack.c.l.b16 %v171
    %v354 = vunpack.c.h.b16 %v171
    %v355 = vunpack.c.l.b16 %v172
    %v356 = vunpack.c.h.b16 %v172
    %v357 = vunpack.c.l.b16 %v173
    %v358 = vunpack.c.h.b16 %v173
    %v359 = vunpack.c.l.b16 %v174
    %v360 = vunpack.c.h.b16 %v174
    %v361 = vunpack.c.l.b16 %v175
    %v362 = vunpack.c.h.b16 %v175
    %v363 = vunpack.c.l.b16 %v176
    %v364 = vunpack.c.h.b16 %v176
    %v365 = vunpack.c.l.b16 %v177
    %v366 = vunpack.c.h.b16 %v177
    %v367 = vunpack.c.l.b16 %v178
    %v368 = vunpack.c.h.b16 %v178
    %v369 = vunpack.c.l.b16 %v179
    %v370 = vunpack.c.h.b16 %v179
    %v371 = vunpack.c.l.b16 %v180
    %v372 = vunpack.c.h.b16 %v180
    %v373 = vunpack.c.l.b16 %v181
    %v374 = vunpack.c.h.b16 %v181
    %v375 = vunpack.c.l.b16 %v182
    %v376 = vunpack.c.h.b16 %v182
    %v377 = vunpack.c.l.b16 %v183
    %v378 = vunpack.c.h.b16 %v183
    %v379 = vunpack.c.l.b16 %v184
    %v380 = vunpack.c.h.b16 %v184
    %v381 = vunpack.c.l.b16 %v185
    %v382 = vunpack.c.h.b16 %v185
    %v383 = vunpack.c.l.b16 %v186
    %v384 = vunpack.c.h.b16 %v186
    %v385 = vunpack.c.l.b16 %v187
    %v386 = vunpack.c.h.b16 %v187
    %v387 = vunpack.c.l.b16 %v188
    %v388 = vunpack.c.h.b16 %v188
    %v389 = vunpack.c.l.b16 %v189
    %v390 = vunpack.c.h.b16 %v189
    %v391 = vunpack.c.l.b16 %v190
    %v392 = vunpack.c.h.b16 %v190
    %v393 = vunpack.c.l.b16 %v191
    %v394 = vunpack.c.h.b16 %v191
    %v395 = vunpack.c.l.b16 %v192
    %v396 = vunpack.c.h.b16 %v192
    %v397 = vunpack.c.l.b16 %v193
    %v398 = vunpack.c.h.b16 %v193
    %v399 = vunpack.c.l.b16 %v194
    %v400 = vunpack.c.h.b16 %v194
    %v401 = vunpack.c.l.b16 %v195
    %v402 = vunpack.c.h.b16 %v195
    %v403 = vunpack.c.l.b16 %v196
    %v404 = vunpack.c.h.b16 %v196
    %v405 = vunpack.c.l.b16 %v197
    %v406 = vunpack.c.h.b16 %v197
    %v407 = vunpack.c.l.b16 %v198
    %v408 = vunpack.c.h.b16 %v198
    %v409 = vunpack.c.l.b16 %v199
    %v410 = vunpack.c.h.b16 %v199
    %v411 = vunpack.c.l.b16 %v200
    %v412 = vunpack.c.h.b16 %v200
    %v413 = vunpack.c.l.b16 %v201
    %v414 = vunpack.c.h.b16 %v201
    %v415 = vunpack.c.l.b16 %v202
    %v416 = vunpack.c.h.b16 %v202
    %v417 = vpack.c.b16 %v293, %v289
    %v418 = vpack.c.b16 %v294, %v290
    %v419 = vpack.c.b16 %v295, %v291
    %v420 = vpack.c.b16 %v296, %v292
    %v421 = vpack.c.b16 %v301, %v297
    %v422 = vpack.c.b16 %v302, %v298
    %v423 = vpack.c.b16 %v303, %v299
    %v424 = vpack.c.b16 %v304, %v300
    %v425 = vpack.c.b16 %v309, %v305
    %v426 = vpack.c.b16 %v310, %v306
    %v427 = vpack.c.b16 %v311, %v307
    %v428 = vpack.c.b16 %v312, %v308
    %v429 = vpack.c.b16 %v317, %v313
    %v430 = vpack.c.b16 %v318, %v314
    %v431 = vpack.c.b16 %v319, %v315
    %v432 = vpack.c.b16 %v320, %v316
    %v433 = vpack.c.b16 %v325, %v321
    %v434 = vpack.c.b16 %v326, %v322
    %v435 = vpack.c.b16 %v327, %v323
    %v436 = vpack.c.b16 %v328, %v324
    %v437 = vpack.c.b16 %v333, %v329
    %v438 = vpack.c.b16 %v334, %v330
    %v439 = vpack.c.b16 %v335, %v331
    %v440 = vpack.c.b16 %v336, %v332
    %v441 = vpack.c.b16 %v341, %v337
    %v442 = vpack.c.b16 %v342, %v338
    %v443 = vpack.c.b16 %v343, %v339
    %v444 = vpack.c.b16 %v344, %v340
    %v445 = vpack.c.b16 %v349, %v345
    %v446 = vpack.c.b16 %v350, %v346
    %v447 = vpack.c.b16 %v351, %v347
    %v448 = vpack.c.b16 %v352, %v348
    %v449 = vpack.c.b16 %v357, %v353
    %v450 = vpack.c.b16 %v358, %v354
    %v451 = vpack.c.b16 %v359, %v355
    %v452 = vpack.c.b16 %v360, %v356
    %v453 = vpack.c.b16 %v365, %v361
    %v454 = vpack.c.b16 %v366, %v362
    %v455 = vpack.c.b16 %v367, %v363
    %v456 = vpack.c.b16 %v368, %v364
    %v457 = vpack.c.b16 %v373, %v369
    %v458 = vpack.c.b16 %v374, %v370
    %v459 = vpack.c.b16 %v375, %v371
    %v460 = vpack.c.b16 %v376, %v372
    %v461 = vpack.c.b16 %v381, %v377
    %v462 = vpack.c.b16 %v382, %v378
    %v463 = vpack.c.b16 %v383, %v379
    %v464 = vpack.c.b16 %v384, %v380
    %v465 = vpack.c.b16 %v389, %v385
    %v466 = vpack.c.b16 %v390, %v386
    %v467 = vpack.c.b16 %v391, %v387
    %v468 = vpack.c.b16 %v392, %v388
    %v469 = vpack.c.b16 %v397, %v393
    %v470 = vpack.c.b16 %v398, %v394
    %v471 = vpack.c.b16 %v399, %v395
    %v472 = vpack.c.b16 %v400, %v396
    %v473 = vpack.c.b16 %v405, %v401
    %v474 = vpack.c.b16 %v406, %v402
    %v475 = vpack.c.b16 %v407, %v403
    %v476 = vpack.c.b16 %v408, %v404
    %v477 = vpack.c.b16 %v413, %v409
    %v478 = vpack.c.b16 %v414, %v410
    %v479 = vpack.c.b16 %v415, %v411
    %v480 = vpack.c.b16 %v416, %v412
    %545 = vmatprep.subr.bf16.mxu0 %v446
    %546 = vmatpush1.bf16.msra.mxu0 %v445
    %547 = vmatprep.subr.bf16.mxu0 %v442
    %548 = vmatpush1.bf16.msra.mxu0 %v441
    %549 = vmatprep.subr.bf16.mxu0 %v438
    %550 = vmatpush1.bf16.msra.mxu0 %v437
    %551 = vmatprep.subr.bf16.mxu0 %v434
    %552 = vmatpush1.bf16.msra.mxu0 %v433
    %553 = vmatprep.subr.bf16.mxu0 %v430
    %554 = vmatpush1.bf16.msra.mxu0 %v429
    %555 = vmatprep.subr.bf16.mxu0 %v426
    %556 = vmatpush1.bf16.msra.mxu0 %v425
    %557 = vmatprep.subr.bf16.mxu0 %v422
    %558 = vmatpush1.bf16.msra.mxu0 %v421
    %559 = vmatprep.subr.bf16.mxu0 %v418
    %560 = vmatpush1.bf16.msra.mxu0 %v417
    %561 = vmatprep.subr.bf16.mxu0 %v478
    %562 = vmatpush2.bf16.msra.mxu0 %v477
    %563 = vmatprep.subr.bf16.mxu0 %v474
    %564 = vmatpush2.bf16.msra.mxu0 %v473
    %565 = vmatprep.subr.bf16.mxu0 %v470
    %566 = vmatpush2.bf16.msra.mxu0 %v469
    %567 = vmatprep.subr.bf16.mxu0 %v466
    %568 = vmatpush2.bf16.msra.mxu0 %v465
    %569 = vmatprep.subr.bf16.mxu0 %v462
    %570 = vmatpush2.bf16.msra.mxu0 %v461
    %571 = vmatprep.subr.bf16.mxu0 %v458
    %572 = vmatpush2.bf16.msra.mxu0 %v457
    %573 = vmatprep.subr.bf16.mxu0 %v454
    %574 = vmatpush2.bf16.msra.mxu0 %v453
    %575 = vmatprep.subr.bf16.mxu0 %v450
    %576 = vmatpush2.bf16.msra.mxu0 %v449
    %577 = vmatprep.mubr.bf16.mxu0 %v138
    %578 = vmatmul.mubr.bf16.gmra.mxu0 %v137
    %v579 = vpop.f32.mrf.mxu0
    %v580 = vadd.f32 %v208, %v579
    %v581 = vpop.f32.mrf.mxu0
    %v582 = vadd.f32 %v212, %v581
    %v583 = vpop.f32.mrf.mxu0
    %v584 = vadd.f32 %v208, %v583
    %v585 = vpop.f32.mrf.mxu0
    %v586 = vadd.f32 %v212, %v585
    %587 = vdwg.mxu0
    %588 = vmatprep.subr.bf16.mxu0 %v448
    %589 = vmatpush1.bf16.msra.mxu0 %v447
    %590 = vmatprep.subr.bf16.mxu0 %v444
    %591 = vmatpush1.bf16.msra.mxu0 %v443
    %592 = vmatprep.subr.bf16.mxu0 %v440
    %593 = vmatpush1.bf16.msra.mxu0 %v439
    %594 = vmatprep.subr.bf16.mxu0 %v436
    %595 = vmatpush1.bf16.msra.mxu0 %v435
    %596 = vmatprep.subr.bf16.mxu0 %v432
    %597 = vmatpush1.bf16.msra.mxu0 %v431
    %598 = vmatprep.subr.bf16.mxu0 %v428
    %599 = vmatpush1.bf16.msra.mxu0 %v427
    %600 = vmatprep.subr.bf16.mxu0 %v424
    %601 = vmatpush1.bf16.msra.mxu0 %v423
    %602 = vmatprep.subr.bf16.mxu0 %v420
    %603 = vmatpush1.bf16.msra.mxu0 %v419
    %604 = vmatprep.subr.bf16.mxu0 %v480
    %605 = vmatpush2.bf16.msra.mxu0 %v479
    %606 = vmatprep.subr.bf16.mxu0 %v476
    %607 = vmatpush2.bf16.msra.mxu0 %v475
    %608 = vmatprep.subr.bf16.mxu0 %v472
    %609 = vmatpush2.bf16.msra.mxu0 %v471
    %610 = vmatprep.subr.bf16.mxu0 %v468
    %611 = vmatpush2.bf16.msra.mxu0 %v467
    %612 = vmatprep.subr.bf16.mxu0 %v464
    %613 = vmatpush2.bf16.msra.mxu0 %v463
    %614 = vmatprep.subr.bf16.mxu0 %v460
    %615 = vmatpush2.bf16.msra.mxu0 %v459
    %616 = vmatprep.subr.bf16.mxu0 %v456
    %617 = vmatpush2.bf16.msra.mxu0 %v455
    %618 = vmatprep.subr.bf16.mxu0 %v452
    %619 = vmatpush2.bf16.msra.mxu0 %v451
    %620 = vmatprep.mubr.bf16.mxu0 %v138
    %621 = vmatmul.mubr.bf16.gmra.mxu0 %v137
    %v622 = vpop.f32.mrf.mxu0
    %v623 = vadd.f32 %v216, %v622
    %v624 = vpop.f32.mrf.mxu0
    %v625 = vadd.f32 %v220, %v624
    %v626 = vpop.f32.mrf.mxu0
    %v627 = vadd.f32 %v216, %v626
    %v628 = vpop.f32.mrf.mxu0
    %v629 = vadd.f32 %v220, %v628
    %630 = vdwg.mxu0
    %v631 = vmax.f32 %v580, 0.0
    %v632 = vmax.f32 %v582, 0.0
    %v633 = vmax.f32 %v623, 0.0
    %v634 = vmax.f32 %v625, 0.0
    %v635 = vmax.f32 %v584, 0.0
    %v636 = vmax.f32 %v586, 0.0
    %v637 = vmax.f32 %v627, 0.0
    %v638 = vmax.f32 %v629, 0.0
    %v639 = vld [vmem:[#allocation8] sm:$0xff]
    %v640 = vld [vmem:[#allocation8 + $0x8] sm:$0xff]
    %v641 = vld [vmem:[#allocation8 + $0x10] sm:$0xff]
    %v642 = vld [vmem:[#allocation8 + $0x18] sm:$0xff]
    %v643 = vld [vmem:[#allocation8 + $0x20] sm:$0xff]
    %v644 = vld [vmem:[#allocation8 + $0x28] sm:$0xff]
    %v645 = vld [vmem:[#allocation8 + $0x30] sm:$0xff]
    %v646 = vld [vmem:[#allocation8 + $0x38] sm:$0xff]
    %v647 = vld [vmem:[#allocation8 + $0x40] sm:$0xff]
    %v648 = vld [vmem:[#allocation8 + $0x48] sm:$0xff]
    %v649 = vld [vmem:[#allocation8 + $0x50] sm:$0xff]
    %v650 = vld [vmem:[#allocation8 + $0x58] sm:$0xff]
    %v651 = vld [vmem:[#allocation8 + $0x60] sm:$0xff]
    %v652 = vld [vmem:[#allocation8 + $0x68] sm:$0xff]
    %v653 = vld [vmem:[#allocation8 + $0x70] sm:$0xff]
    %v654 = vld [vmem:[#allocation8 + $0x78] sm:$0xff]
    %v655 = vld [vmem:[#allocation8 + $0x80] sm:$0xff]
    %v656 = vld [vmem:[#allocation8 + $0x88] sm:$0xff]
    %v657 = vld [vmem:[#allocation8 + $0x90] sm:$0xff]
    %v658 = vld [vmem:[#allocation8 + $0x98] sm:$0xff]
    %v659 = vld [vmem:[#allocation8 + $0xa0] sm:$0xff]
    %v660 = vld [vmem:[#allocation8 + $0xa8] sm:$0xff]
    %v661 = vld [vmem:[#allocation8 + $0xb0] sm:$0xff]
    %v662 = vld [vmem:[#allocation8 + $0xb8] sm:$0xff]
    %v663 = vld [vmem:[#allocation8 + $0xc0] sm:$0xff]
    %v664 = vld [vmem:[#allocation8 + $0xc8] sm:$0xff]
    %v665 = vld [vmem:[#allocation8 + $0xd0] sm:$0xff]
    %v666 = vld [vmem:[#allocation8 + $0xd8] sm:$0xff]
    %v667 = vld [vmem:[#allocation8 + $0xe0] sm:$0xff]
    %v668 = vld [vmem:[#allocation8 + $0xe8] sm:$0xff]
    %v669 = vld [vmem:[#allocation8 + $0xf0] sm:$0xff]
    %v670 = vld [vmem:[#allocation8 + $0xf8] sm:$0xff]
    %v671 = vld [vmem:[#allocation8 + $0x100] sm:$0xff]
    %v672 = vld [vmem:[#allocation8 + $0x108] sm:$0xff]
    %v673 = vld [vmem:[#allocation8 + $0x110] sm:$0xff]
    %v674 = vld [vmem:[#allocation8 + $0x118] sm:$0xff]
    %v675 = vld [vmem:[#allocation8 + $0x120] sm:$0xff]
    %v676 = vld [vmem:[#allocation8 + $0x128] sm:$0xff]
    %v677 = vld [vmem:[#allocation8 + $0x130] sm:$0xff]
    %v678 = vld [vmem:[#allocation8 + $0x138] sm:$0xff]
    %v679 = vld [vmem:[#allocation8 + $0x140] sm:$0xff]
    %v680 = vld [vmem:[#allocation8 + $0x148] sm:$0xff]
    %v681 = vld [vmem:[#allocation8 + $0x150] sm:$0xff]
    %v682 = vld [vmem:[#allocation8 + $0x158] sm:$0xff]
    %v683 = vld [vmem:[#allocation8 + $0x160] sm:$0xff]
    %v684 = vld [vmem:[#allocation8 + $0x168] sm:$0xff]
    %v685 = vld [vmem:[#allocation8 + $0x170] sm:$0xff]
    %v686 = vld [vmem:[#allocation8 + $0x178] sm:$0xff]
    %v687 = vld [vmem:[#allocation8 + $0x180] sm:$0xff]
    %v688 = vld [vmem:[#allocation8 + $0x188] sm:$0xff]
    %v689 = vld [vmem:[#allocation8 + $0x190] sm:$0xff]
    %v690 = vld [vmem:[#allocation8 + $0x198] sm:$0xff]
    %v691 = vld [vmem:[#allocation8 + $0x1a0] sm:$0xff]
    %v692 = vld [vmem:[#allocation8 + $0x1a8] sm:$0xff]
    %v693 = vld [vmem:[#allocation8 + $0x1b0] sm:$0xff]
    %v694 = vld [vmem:[#allocation8 + $0x1b8] sm:$0xff]
    %v695 = vld [vmem:[#allocation8 + $0x1c0] sm:$0xff]
    %v696 = vld [vmem:[#allocation8 + $0x1c8] sm:$0xff]
    %v697 = vld [vmem:[#allocation8 + $0x1d0] sm:$0xff]
    %v698 = vld [vmem:[#allocation8 + $0x1d8] sm:$0xff]
    %v699 = vld [vmem:[#allocation8 + $0x1e0] sm:$0xff]
    %v700 = vld [vmem:[#allocation8 + $0x1e8] sm:$0xff]
    %v701 = vld [vmem:[#allocation8 + $0x1f0] sm:$0xff]
    %v702 = vld [vmem:[#allocation8 + $0x1f8] sm:$0xff]
    %v703 = vld [vmem:[#allocation8 + $0x200] sm:$0xff]
    %v704 = vld [vmem:[#allocation8 + $0x208] sm:$0xff]
    %v705 = vld [vmem:[#allocation8 + $0x210] sm:$0xff]
    %v706 = vld [vmem:[#allocation8 + $0x218] sm:$0xff]
    %v707 = vld [vmem:[#allocation8 + $0x220] sm:$0xff]
    %v708 = vld [vmem:[#allocation8 + $0x228] sm:$0xff]
    %v709 = vld [vmem:[#allocation8 + $0x230] sm:$0xff]
    %v710 = vld [vmem:[#allocation8 + $0x238] sm:$0xff]
    %v711 = vld [vmem:[#allocation8 + $0x240] sm:$0xff]
    %v712 = vld [vmem:[#allocation8 + $0x248] sm:$0xff]
    %v713 = vld [vmem:[#allocation8 + $0x250] sm:$0xff]
    %v714 = vld [vmem:[#allocation8 + $0x258] sm:$0xff]
    %v715 = vld [vmem:[#allocation8 + $0x260] sm:$0xff]
    %v716 = vld [vmem:[#allocation8 + $0x268] sm:$0xff]
    %v717 = vld [vmem:[#allocation8 + $0x270] sm:$0xff]
    %v718 = vld [vmem:[#allocation8 + $0x278] sm:$0xff]
    %v719 = vld [vmem:[#allocation8 + $0x280] sm:$0xff]
    %v720 = vld [vmem:[#allocation8 + $0x288] sm:$0xff]
    %v721 = vld [vmem:[#allocation8 + $0x290] sm:$0xff]
    %v722 = vld [vmem:[#allocation8 + $0x298] sm:$0xff]
    %v723 = vld [vmem:[#allocation8 + $0x2a0] sm:$0xff]
    %v724 = vld [vmem:[#allocation8 + $0x2a8] sm:$0xff]
    %v725 = vld [vmem:[#allocation8 + $0x2b0] sm:$0xff]
    %v726 = vld [vmem:[#allocation8 + $0x2b8] sm:$0xff]
    %v727 = vld [vmem:[#allocation8 + $0x2c0] sm:$0xff]
    %v728 = vld [vmem:[#allocation8 + $0x2c8] sm:$0xff]
    %v729 = vld [vmem:[#allocation8 + $0x2d0] sm:$0xff]
    %v730 = vld [vmem:[#allocation8 + $0x2d8] sm:$0xff]
    %v731 = vld [vmem:[#allocation8 + $0x2e0] sm:$0xff]
    %v732 = vld [vmem:[#allocation8 + $0x2e8] sm:$0xff]
    %v733 = vld [vmem:[#allocation8 + $0x2f0] sm:$0xff]
    %v734 = vld [vmem:[#allocation8 + $0x2f8] sm:$0xff]
    %v735 = vld [vmem:[#allocation8 + $0x300] sm:$0xff]
    %v736 = vld [vmem:[#allocation8 + $0x308] sm:$0xff]
    %v737 = vld [vmem:[#allocation8 + $0x310] sm:$0xff]
    %v738 = vld [vmem:[#allocation8 + $0x318] sm:$0xff]
    %v739 = vld [vmem:[#allocation8 + $0x320] sm:$0xff]
    %v740 = vld [vmem:[#allocation8 + $0x328] sm:$0xff]
    %v741 = vld [vmem:[#allocation8 + $0x330] sm:$0xff]
    %v742 = vld [vmem:[#allocation8 + $0x338] sm:$0xff]
    %v743 = vld [vmem:[#allocation8 + $0x340] sm:$0xff]
    %v744 = vld [vmem:[#allocation8 + $0x348] sm:$0xff]
    %v745 = vld [vmem:[#allocation8 + $0x350] sm:$0xff]
    %v746 = vld [vmem:[#allocation8 + $0x358] sm:$0xff]
    %v747 = vld [vmem:[#allocation8 + $0x360] sm:$0xff]
    %v748 = vld [vmem:[#allocation8 + $0x368] sm:$0xff]
    %v749 = vld [vmem:[#allocation8 + $0x370] sm:$0xff]
    %v750 = vld [vmem:[#allocation8 + $0x378] sm:$0xff]
    %v751 = vld [vmem:[#allocation8 + $0x380] sm:$0xff]
    %v752 = vld [vmem:[#allocation8 + $0x388] sm:$0xff]
    %v753 = vld [vmem:[#allocation8 + $0x390] sm:$0xff]
    %v754 = vld [vmem:[#allocation8 + $0x398] sm:$0xff]
    %v755 = vld [vmem:[#allocation8 + $0x3a0] sm:$0xff]
    %v756 = vld [vmem:[#allocation8 + $0x3a8] sm:$0xff]
    %v757 = vld [vmem:[#allocation8 + $0x3b0] sm:$0xff]
    %v758 = vld [vmem:[#allocation8 + $0x3b8] sm:$0xff]
    %v759 = vld [vmem:[#allocation8 + $0x3c0] sm:$0xff]
    %v760 = vld [vmem:[#allocation8 + $0x3c8] sm:$0xff]
    %v761 = vld [vmem:[#allocation8 + $0x3d0] sm:$0xff]
    %v762 = vld [vmem:[#allocation8 + $0x3d8] sm:$0xff]
    %v763 = vld [vmem:[#allocation8 + $0x3e0] sm:$0xff]
    %v764 = vld [vmem:[#allocation8 + $0x3e8] sm:$0xff]
    %v765 = vld [vmem:[#allocation8 + $0x3f0] sm:$0xff]
    %v766 = vld [vmem:[#allocation8 + $0x3f8] sm:$0xff]
    %v767 = vld [vmem:[#allocation10] sm:$0x3]
    %v769 = vlaneseq
    %v770 = vshrl.u32 %v769, 7
    %v771 = vsub.s32 0, %v770
    %v772 = vrot.slane %v767, %v771
    %v773 = vlaneseq
    %v774 = vshrl.u32 %v773, 7
    %v775 = vsub.s32 1, %v774
    %v776 = vrot.slane %v767, %v775
    %779 = vmatprep.subr.mxu0 %v670
    %780 = vmatpush1.msra.mxu0 %v669
    %781 = vmatprep.subr.mxu0 %v668
    %782 = vmatpush1.msra.mxu0 %v667
    %783 = vmatprep.subr.mxu0 %v666
    %784 = vmatpush1.msra.mxu0 %v665
    %785 = vmatprep.subr.mxu0 %v664
    %786 = vmatpush1.msra.mxu0 %v663
    %787 = vmatprep.subr.mxu0 %v662
    %788 = vmatpush1.msra.mxu0 %v661
    %789 = vmatprep.subr.mxu0 %v660
    %790 = vmatpush1.msra.mxu0 %v659
    %791 = vmatprep.subr.mxu0 %v658
    %792 = vmatpush1.msra.mxu0 %v657
    %793 = vmatprep.subr.mxu0 %v656
    %794 = vmatpush1.msra.mxu0 %v655
    %795 = vmatprep.subr.mxu0 %v654
    %796 = vmatpush1.msra.mxu0 %v653
    %797 = vmatprep.subr.mxu0 %v652
    %798 = vmatpush1.msra.mxu0 %v651
    %799 = vmatprep.subr.mxu0 %v650
    %800 = vmatpush1.msra.mxu0 %v649
    %801 = vmatprep.subr.mxu0 %v648
    %802 = vmatpush1.msra.mxu0 %v647
    %803 = vmatprep.subr.mxu0 %v646
    %804 = vmatpush1.msra.mxu0 %v645
    %805 = vmatprep.subr.mxu0 %v644
    %806 = vmatpush1.msra.mxu0 %v643
    %807 = vmatprep.subr.mxu0 %v642
    %808 = vmatpush1.msra.mxu0 %v641
    %809 = vmatprep.subr.mxu0 %v640
    %810 = vmatpush1.msra.mxu0 %v639
    %811 = vmatprep.subr.mxu0 %v702
    %812 = vmatpush2.msra.mxu0 %v701
    %813 = vmatprep.subr.mxu0 %v700
    %814 = vmatpush2.msra.mxu0 %v699
    %815 = vmatprep.subr.mxu0 %v698
    %816 = vmatpush2.msra.mxu0 %v697
    %817 = vmatprep.subr.mxu0 %v696
    %818 = vmatpush2.msra.mxu0 %v695
    %819 = vmatprep.subr.mxu0 %v694
    %820 = vmatpush2.msra.mxu0 %v693
    %821 = vmatprep.subr.mxu0 %v692
    %822 = vmatpush2.msra.mxu0 %v691
    %823 = vmatprep.subr.mxu0 %v690
    %824 = vmatpush2.msra.mxu0 %v689
    %825 = vmatprep.subr.mxu0 %v688
    %826 = vmatpush2.msra.mxu0 %v687
    %827 = vmatprep.subr.mxu0 %v686
    %828 = vmatpush2.msra.mxu0 %v685
    %829 = vmatprep.subr.mxu0 %v684
    %830 = vmatpush2.msra.mxu0 %v683
    %831 = vmatprep.subr.mxu0 %v682
    %832 = vmatpush2.msra.mxu0 %v681
    %833 = vmatprep.subr.mxu0 %v680
    %834 = vmatpush2.msra.mxu0 %v679
    %835 = vmatprep.subr.mxu0 %v678
    %836 = vmatpush2.msra.mxu0 %v677
    %837 = vmatprep.subr.mxu0 %v676
    %838 = vmatpush2.msra.mxu0 %v675
    %839 = vmatprep.subr.mxu0 %v674
    %840 = vmatpush2.msra.mxu0 %v673
    %841 = vmatprep.subr.mxu0 %v672
    %842 = vmatpush2.msra.mxu0 %v671
    %843 = vmatprep.mubr.f32.mxu0 %v632
    %844 = vmatmul.mubr.f32.gmra.mxu0 %v631
    %v845 = vpop.f32.mrf.mxu0
    %v846 = vadd.f32 %v772, %v845
    %v847 = vpop.f32.mrf.mxu0
    %v848 = vadd.f32 %v776, %v847
    %849 = vmatprep.mubr.f32.mxu0 %v636
    %850 = vmatmul.mubr.f32.gmra.mxu0 %v635
    %v851 = vpop.f32.mrf.mxu0
    %v852 = vadd.f32 %v772, %v851
    %v853 = vpop.f32.mrf.mxu0
    %v854 = vadd.f32 %v776, %v853
    %855 = vdwg.mxu0
    %856 = vmatprep.subr.mxu0 %v734
    %857 = vmatpush1.msra.mxu0 %v733
    %858 = vmatprep.subr.mxu0 %v732
    %859 = vmatpush1.msra.mxu0 %v731
    %860 = vmatprep.subr.mxu0 %v730
    %861 = vmatpush1.msra.mxu0 %v729
    %862 = vmatprep.subr.mxu0 %v728
    %863 = vmatpush1.msra.mxu0 %v727
    %864 = vmatprep.subr.mxu0 %v726
    %865 = vmatpush1.msra.mxu0 %v725
    %866 = vmatprep.subr.mxu0 %v724
    %867 = vmatpush1.msra.mxu0 %v723
    %868 = vmatprep.subr.mxu0 %v722
    %869 = vmatpush1.msra.mxu0 %v721
    %870 = vmatprep.subr.mxu0 %v720
    %871 = vmatpush1.msra.mxu0 %v719
    %872 = vmatprep.subr.mxu0 %v718
    %873 = vmatpush1.msra.mxu0 %v717
    %874 = vmatprep.subr.mxu0 %v716
    %875 = vmatpush1.msra.mxu0 %v715
    %876 = vmatprep.subr.mxu0 %v714
    %877 = vmatpush1.msra.mxu0 %v713
    %878 = vmatprep.subr.mxu0 %v712
    %879 = vmatpush1.msra.mxu0 %v711
    %880 = vmatprep.subr.mxu0 %v710
    %881 = vmatpush1.msra.mxu0 %v709
    %882 = vmatprep.subr.mxu0 %v708
    %883 = vmatpush1.msra.mxu0 %v707
    %884 = vmatprep.subr.mxu0 %v706
    %885 = vmatpush1.msra.mxu0 %v705
    %886 = vmatprep.subr.mxu0 %v704
    %887 = vmatpush1.msra.mxu0 %v703
    %888 = vmatprep.subr.mxu0 %v766
    %889 = vmatpush2.msra.mxu0 %v765
    %890 = vmatprep.subr.mxu0 %v764
    %891 = vmatpush2.msra.mxu0 %v763
    %892 = vmatprep.subr.mxu0 %v762
    %893 = vmatpush2.msra.mxu0 %v761
    %894 = vmatprep.subr.mxu0 %v760
    %895 = vmatpush2.msra.mxu0 %v759
    %896 = vmatprep.subr.mxu0 %v758
    %897 = vmatpush2.msra.mxu0 %v757
    %898 = vmatprep.subr.mxu0 %v756
    %899 = vmatpush2.msra.mxu0 %v755
    %900 = vmatprep.subr.mxu0 %v754
    %901 = vmatpush2.msra.mxu0 %v753
    %902 = vmatprep.subr.mxu0 %v752
    %903 = vmatpush2.msra.mxu0 %v751
    %904 = vmatprep.subr.mxu0 %v750
    %905 = vmatpush2.msra.mxu0 %v749
    %906 = vmatprep.subr.mxu0 %v748
    %907 = vmatpush2.msra.mxu0 %v747
    %908 = vmatprep.subr.mxu0 %v746
    %909 = vmatpush2.msra.mxu0 %v745
    %910 = vmatprep.subr.mxu0 %v744
    %911 = vmatpush2.msra.mxu0 %v743
    %912 = vmatprep.subr.mxu0 %v742
    %913 = vmatpush2.msra.mxu0 %v741
    %914 = vmatprep.subr.mxu0 %v740
    %915 = vmatpush2.msra.mxu0 %v739
    %916 = vmatprep.subr.mxu0 %v738
    %917 = vmatpush2.msra.mxu0 %v737
    %918 = vmatprep.subr.mxu0 %v736
    %919 = vmatpush2.msra.mxu0 %v735
    %920 = vmatprep.mubr.f32.mxu0 %v634
    %921 = vmatmul.mubr.f32.gmra.mxu0 %v633
    %v922 = vpop.f32.mrf.mxu0
    %v923 = vadd.f32 %v846, %v922
    %v924 = vpop.f32.mrf.mxu0
    %v925 = vadd.f32 %v848, %v924
    %926 = vmatprep.mubr.f32.mxu0 %v638
    %927 = vmatmul.mubr.f32.gmra.mxu0 %v637
    %v928 = vpop.f32.mrf.mxu0
    %v929 = vadd.f32 %v852, %v928
    %v930 = vpop.f32.mrf.mxu0
    %v931 = vadd.f32 %v854, %v930
    %932 = vdwg.mxu0
    %v933 = vmul.f32 %v925, 0.5
    %v934 = vmul.f32 %v931, 0.5
    %v935 = vmul.f32 %v933, 1.442695
    %v936 = vpow.pop %v935
    %v937 = vmul.f32 %v934, 1.442695
    %v938 = vpow.pop %v937
    %v939 = vld [vmem:[#allocation5] sm:$0xff]
    %v940 = vld [vmem:[#allocation5 + $0x8] sm:$0xff]
    %v941 = vmul.f32 %v939, %v936
    %v942 = vmul.f32 %v940, %v938
    %v943 = vadd.f32 %v923, %v941
    %v944 = vadd.f32 %v929, %v942
    %v945 = vpack.c.bf16 %v944, %v943
    %v946 = vld [vmem:[#allocation11] sm:$0xff]
    %v947 = vld [vmem:[#allocation11 + $0x8] sm:$0xff]
    %v948 = vld [vmem:[#allocation11 + $0x10] sm:$0xff]
    %v949 = vld [vmem:[#allocation11 + $0x18] sm:$0xff]
    %v950 = vld [vmem:[#allocation11 + $0x20] sm:$0xff]
    %v951 = vld [vmem:[#allocation11 + $0x28] sm:$0xff]
    %v952 = vld [vmem:[#allocation11 + $0x30] sm:$0xff]
    %v953 = vld [vmem:[#allocation11 + $0x38] sm:$0xff]
    %v954 = vld [vmem:[#allocation11 + $0x40] sm:$0xff]
    %v955 = vld [vmem:[#allocation11 + $0x48] sm:$0xff]
    %v956 = vld [vmem:[#allocation11 + $0x50] sm:$0xff]
    %v957 = vld [vmem:[#allocation11 + $0x58] sm:$0xff]
    %v958 = vld [vmem:[#allocation11 + $0x60] sm:$0xff]
    %v959 = vld [vmem:[#allocation11 + $0x68] sm:$0xff]
    %v960 = vld [vmem:[#allocation11 + $0x70] sm:$0xff]
    %v961 = vld [vmem:[#allocation11 + $0x78] sm:$0xff]
    %v962 = vld [vmem:[#allocation11 + $0x80] sm:$0xff]
    %v963 = vld [vmem:[#allocation11 + $0x88] sm:$0xff]
    %v964 = vld [vmem:[#allocation11 + $0x90] sm:$0xff]
    %v965 = vld [vmem:[#allocation11 + $0x98] sm:$0xff]
    %v966 = vld [vmem:[#allocation11 + $0xa0] sm:$0xff]
    %v967 = vld [vmem:[#allocation11 + $0xa8] sm:$0xff]
    %v968 = vld [vmem:[#allocation11 + $0xb0] sm:$0xff]
    %v969 = vld [vmem:[#allocation11 + $0xb8] sm:$0xff]
    %v970 = vld [vmem:[#allocation11 + $0xc0] sm:$0xff]
    %v971 = vld [vmem:[#allocation11 + $0xc8] sm:$0xff]
    %v972 = vld [vmem:[#allocation11 + $0xd0] sm:$0xff]
    %v973 = vld [vmem:[#allocation11 + $0xd8] sm:$0xff]
    %v974 = vld [vmem:[#allocation11 + $0xe0] sm:$0xff]
    %v975 = vld [vmem:[#allocation11 + $0xe8] sm:$0xff]
    %v976 = vld [vmem:[#allocation11 + $0xf0] sm:$0xff]
    %v977 = vld [vmem:[#allocation11 + $0xf8] sm:$0xff]
    %v978 = vld [vmem:[%s7] sm:$0xf]
    %v980 = vlaneseq
    %v981 = vshrl.u32 %v980, 7
    %v982 = vsub.s32 0, %v981
    %v983 = vrot.slane %v978, %v982
    %v984 = vlaneseq
    %v985 = vshrl.u32 %v984, 7
    %v986 = vsub.s32 1, %v985
    %v987 = vrot.slane %v978, %v986
    %v988 = vlaneseq
    %v989 = vshrl.u32 %v988, 7
    %v990 = vsub.s32 2, %v989
    %v991 = vrot.slane %v978, %v990
    %v992 = vlaneseq
    %v993 = vshrl.u32 %v992, 7
    %v994 = vsub.s32 3, %v993
    %v995 = vrot.slane %v978, %v994
    %v1032 = vunpack.c.l.b16 %v946
    %v1033 = vunpack.c.h.b16 %v946
    %v1034 = vunpack.c.l.b16 %v947
    %v1035 = vunpack.c.h.b16 %v947
    %v1036 = vunpack.c.l.b16 %v948
    %v1037 = vunpack.c.h.b16 %v948
    %v1038 = vunpack.c.l.b16 %v949
    %v1039 = vunpack.c.h.b16 %v949
    %v1040 = vunpack.c.l.b16 %v950
    %v1041 = vunpack.c.h.b16 %v950
    %v1042 = vunpack.c.l.b16 %v951
    %v1043 = vunpack.c.h.b16 %v951
    %v1044 = vunpack.c.l.b16 %v952
    %v1045 = vunpack.c.h.b16 %v952
    %v1046 = vunpack.c.l.b16 %v953
    %v1047 = vunpack.c.h.b16 %v953
    %v1048 = vunpack.c.l.b16 %v954
    %v1049 = vunpack.c.h.b16 %v954
    %v1050 = vunpack.c.l.b16 %v955
    %v1051 = vunpack.c.h.b16 %v955
    %v1052 = vunpack.c.l.b16 %v956
    %v1053 = vunpack.c.h.b16 %v956
    %v1054 = vunpack.c.l.b16 %v957
    %v1055 = vunpack.c.h.b16 %v957
    %v1056 = vunpack.c.l.b16 %v958
    %v1057 = vunpack.c.h.b16 %v958
    %v1058 = vunpack.c.l.b16 %v959
    %v1059 = vunpack.c.h.b16 %v959
    %v1060 = vunpack.c.l.b16 %v960
    %v1061 = vunpack.c.h.b16 %v960
    %v1062 = vunpack.c.l.b16 %v961
    %v1063 = vunpack.c.h.b16 %v961
    %v1064 = vunpack.c.l.b16 %v962
    %v1065 = vunpack.c.h.b16 %v962
    %v1066 = vunpack.c.l.b16 %v963
    %v1067 = vunpack.c.h.b16 %v963
    %v1068 = vunpack.c.l.b16 %v964
    %v1069 = vunpack.c.h.b16 %v964
    %v1070 = vunpack.c.l.b16 %v965
    %v1071 = vunpack.c.h.b16 %v965
    %v1072 = vunpack.c.l.b16 %v966
    %v1073 = vunpack.c.h.b16 %v966
    %v1074 = vunpack.c.l.b16 %v967
    %v1075 = vunpack.c.h.b16 %v967
    %v1076 = vunpack.c.l.b16 %v968
    %v1077 = vunpack.c.h.b16 %v968
    %v1078 = vunpack.c.l.b16 %v969
    %v1079 = vunpack.c.h.b16 %v969
    %v1080 = vunpack.c.l.b16 %v970
    %v1081 = vunpack.c.h.b16 %v970
    %v1082 = vunpack.c.l.b16 %v971
    %v1083 = vunpack.c.h.b16 %v971
    %v1084 = vunpack.c.l.b16 %v972
    %v1085 = vunpack.c.h.b16 %v972
    %v1086 = vunpack.c.l.b16 %v973
    %v1087 = vunpack.c.h.b16 %v973
    %v1088 = vunpack.c.l.b16 %v974
    %v1089 = vunpack.c.h.b16 %v974
    %v1090 = vunpack.c.l.b16 %v975
    %v1091 = vunpack.c.h.b16 %v975
    %v1092 = vunpack.c.l.b16 %v976
    %v1093 = vunpack.c.h.b16 %v976
    %v1094 = vunpack.c.l.b16 %v977
    %v1095 = vunpack.c.h.b16 %v977
    %v1096 = vpack.c.b16 %v1036, %v1032
    %v1097 = vpack.c.b16 %v1037, %v1033
    %v1098 = vpack.c.b16 %v1038, %v1034
    %v1099 = vpack.c.b16 %v1039, %v1035
    %v1100 = vpack.c.b16 %v1044, %v1040
    %v1101 = vpack.c.b16 %v1045, %v1041
    %v1102 = vpack.c.b16 %v1046, %v1042
    %v1103 = vpack.c.b16 %v1047, %v1043
    %v1104 = vpack.c.b16 %v1052, %v1048
    %v1105 = vpack.c.b16 %v1053, %v1049
    %v1106 = vpack.c.b16 %v1054, %v1050
    %v1107 = vpack.c.b16 %v1055, %v1051
    %v1108 = vpack.c.b16 %v1060, %v1056
    %v1109 = vpack.c.b16 %v1061, %v1057
    %v1110 = vpack.c.b16 %v1062, %v1058
    %v1111 = vpack.c.b16 %v1063, %v1059
    %v1112 = vpack.c.b16 %v1068, %v1064
    %v1113 = vpack.c.b16 %v1069, %v1065
    %v1114 = vpack.c.b16 %v1070, %v1066
    %v1115 = vpack.c.b16 %v1071, %v1067
    %v1116 = vpack.c.b16 %v1076, %v1072
    %v1117 = vpack.c.b16 %v1077, %v1073
    %v1118 = vpack.c.b16 %v1078, %v1074
    %v1119 = vpack.c.b16 %v1079, %v1075
    %v1120 = vpack.c.b16 %v1084, %v1080
    %v1121 = vpack.c.b16 %v1085, %v1081
    %v1122 = vpack.c.b16 %v1086, %v1082
    %v1123 = vpack.c.b16 %v1087, %v1083
    %v1124 = vpack.c.b16 %v1092, %v1088
    %v1125 = vpack.c.b16 %v1093, %v1089
    %v1126 = vpack.c.b16 %v1094, %v1090
    %v1127 = vpack.c.b16 %v1095, %v1091
    %1160 = vmatprep.subr.bf16.mxu0 %v1125
    %1161 = vmatpush1.bf16.msra.mxu0 %v1124
    %1162 = vmatprep.subr.bf16.mxu0 %v1121
    %1163 = vmatpush1.bf16.msra.mxu0 %v1120
    %1164 = vmatprep.subr.bf16.mxu0 %v1117
    %1165 = vmatpush1.bf16.msra.mxu0 %v1116
    %1166 = vmatprep.subr.bf16.mxu0 %v1113
    %1167 = vmatpush1.bf16.msra.mxu0 %v1112
    %1168 = vmatprep.subr.bf16.mxu0 %v1109
    %1169 = vmatpush1.bf16.msra.mxu0 %v1108
    %1170 = vmatprep.subr.bf16.mxu0 %v1105
    %1171 = vmatpush1.bf16.msra.mxu0 %v1104
    %1172 = vmatprep.subr.bf16.mxu0 %v1101
    %1173 = vmatpush1.bf16.msra.mxu0 %v1100
    %1174 = vmatprep.subr.bf16.mxu0 %v1097
    %1175 = vmatpush1.bf16.msra.mxu0 %v1096
    %1176 = vmatprep.subr.bf16.mxu0 0
    %1177 = vmatpush2.bf16.msra.mxu0 0
    %1178 = vmatprep.subr.bf16.mxu0 0
    %1179 = vmatpush2.bf16.msra.mxu0 0
    %1180 = vmatprep.subr.bf16.mxu0 0
    %1181 = vmatpush2.bf16.msra.mxu0 0
    %1182 = vmatprep.subr.bf16.mxu0 0
    %1183 = vmatpush2.bf16.msra.mxu0 0
    %1184 = vmatprep.subr.bf16.mxu0 0
    %1185 = vmatpush2.bf16.msra.mxu0 0
    %1186 = vmatprep.subr.bf16.mxu0 0
    %1187 = vmatpush2.bf16.msra.mxu0 0
    %1188 = vmatprep.subr.bf16.mxu0 0
    %1189 = vmatpush2.bf16.msra.mxu0 0
    %1190 = vmatprep.subr.bf16.mxu0 0
    %1191 = vmatpush2.bf16.msra.mxu0 0
    %1192 = vmatprep.mubr.bf16.mxu0 0
    %1193 = vmatmul.mubr.bf16.gmra.mxu0 %v945
    %v1194 = vpop.f32.mrf.mxu0
    %v1195 = vadd.f32 %v983, %v1194
    %v1196 = vpop.f32.mrf.mxu0
    %v1197 = vadd.f32 %v987, %v1196
    %v1198 = vpop.f32.mrf.mxu0
    %v1199 = vadd.f32 %v983, %v1198
    %v1200 = vpop.f32.mrf.mxu0
    %v1201 = vadd.f32 %v987, %v1200
    %1202 = vdwg.mxu0
    %1203 = vmatprep.subr.bf16.mxu0 %v1127
    %1204 = vmatpush1.bf16.msra.mxu0 %v1126
    %1205 = vmatprep.subr.bf16.mxu0 %v1123
    %1206 = vmatpush1.bf16.msra.mxu0 %v1122
    %1207 = vmatprep.subr.bf16.mxu0 %v1119
    %1208 = vmatpush1.bf16.msra.mxu0 %v1118
    %1209 = vmatprep.subr.bf16.mxu0 %v1115
    %1210 = vmatpush1.bf16.msra.mxu0 %v1114
    %1211 = vmatprep.subr.bf16.mxu0 %v1111
    %1212 = vmatpush1.bf16.msra.mxu0 %v1110
    %1213 = vmatprep.subr.bf16.mxu0 %v1107
    %1214 = vmatpush1.bf16.msra.mxu0 %v1106
    %1215 = vmatprep.subr.bf16.mxu0 %v1103
    %1216 = vmatpush1.bf16.msra.mxu0 %v1102
    %1217 = vmatprep.subr.bf16.mxu0 %v1099
    %1218 = vmatpush1.bf16.msra.mxu0 %v1098
    %1219 = vmatprep.subr.bf16.mxu0 0
    %1220 = vmatpush2.bf16.msra.mxu0 0
    %1221 = vmatprep.subr.bf16.mxu0 0
    %1222 = vmatpush2.bf16.msra.mxu0 0
    %1223 = vmatprep.subr.bf16.mxu0 0
    %1224 = vmatpush2.bf16.msra.mxu0 0
    %1225 = vmatprep.subr.bf16.mxu0 0
    %1226 = vmatpush2.bf16.msra.mxu0 0
    %1227 = vmatprep.subr.bf16.mxu0 0
    %1228 = vmatpush2.bf16.msra.mxu0 0
    %1229 = vmatprep.subr.bf16.mxu0 0
    %1230 = vmatpush2.bf16.msra.mxu0 0
    %1231 = vmatprep.subr.bf16.mxu0 0
    %1232 = vmatpush2.bf16.msra.mxu0 0
    %1233 = vmatprep.subr.bf16.mxu0 0
    %1234 = vmatpush2.bf16.msra.mxu0 0
    %1235 = vmatprep.mubr.bf16.mxu0 0
    %1236 = vmatmul.mubr.bf16.gmra.mxu0 %v945
    %v1237 = vpop.f32.mrf.mxu0
    %v1238 = vadd.f32 %v991, %v1237
    %v1239 = vpop.f32.mrf.mxu0
    %v1240 = vadd.f32 %v995, %v1239
    %v1241 = vpop.f32.mrf.mxu0
    %v1242 = vadd.f32 %v991, %v1241
    %v1243 = vpop.f32.mrf.mxu0
    %v1244 = vadd.f32 %v995, %v1243
    %1245 = vdwg.mxu0
    %v1246 = vmax.f32 %v1195, 0.0
    %v1247 = vmax.f32 %v1197, 0.0
    %v1248 = vmax.f32 %v1238, 0.0
    %v1249 = vmax.f32 %v1240, 0.0
    %v1250 = vmax.f32 %v1199, 0.0
    %v1251 = vmax.f32 %v1201, 0.0
    %v1252 = vmax.f32 %v1242, 0.0
    %v1253 = vmax.f32 %v1244, 0.0
    %v1254 = vpack.c.bf16 %v1250, %v1246
    %v1255 = vpack.c.bf16 %v1251, %v1247
    %v1256 = vpack.c.bf16 %v1252, %v1248
    %v1257 = vpack.c.bf16 %v1253, %v1249
    %v1258 = vld [vmem:[#allocation13] sm:$0xff]
    %v1259 = vld [vmem:[#allocation13 + $0x8] sm:$0xff]
    %v1260 = vld [vmem:[#allocation13 + $0x10] sm:$0xff]
    %v1261 = vld [vmem:[#allocation13 + $0x18] sm:$0xff]
    %v1262 = vld [vmem:[#allocation13 + $0x20] sm:$0xff]
    %v1263 = vld [vmem:[#allocation13 + $0x28] sm:$0xff]
    %v1264 = vld [vmem:[#allocation13 + $0x30] sm:$0xff]
    %v1265 = vld [vmem:[#allocation13 + $0x38] sm:$0xff]
    %v1266 = vld [vmem:[#allocation13 + $0x40] sm:$0xff]
    %v1267 = vld [vmem:[#allocation13 + $0x48] sm:$0xff]
    %v1268 = vld [vmem:[#allocation13 + $0x50] sm:$0xff]
    %v1269 = vld [vmem:[#allocation13 + $0x58] sm:$0xff]
    %v1270 = vld [vmem:[#allocation13 + $0x60] sm:$0xff]
    %v1271 = vld [vmem:[#allocation13 + $0x68] sm:$0xff]
    %v1272 = vld [vmem:[#allocation13 + $0x70] sm:$0xff]
    %v1273 = vld [vmem:[#allocation13 + $0x78] sm:$0xff]
    %v1274 = vld [vmem:[#allocation13 + $0x80] sm:$0xff]
    %v1275 = vld [vmem:[#allocation13 + $0x88] sm:$0xff]
    %v1276 = vld [vmem:[#allocation13 + $0x90] sm:$0xff]
    %v1277 = vld [vmem:[#allocation13 + $0x98] sm:$0xff]
    %v1278 = vld [vmem:[#allocation13 + $0xa0] sm:$0xff]
    %v1279 = vld [vmem:[#allocation13 + $0xa8] sm:$0xff]
    %v1280 = vld [vmem:[#allocation13 + $0xb0] sm:$0xff]
    %v1281 = vld [vmem:[#allocation13 + $0xb8] sm:$0xff]
    %v1282 = vld [vmem:[#allocation13 + $0xc0] sm:$0xff]
    %v1283 = vld [vmem:[#allocation13 + $0xc8] sm:$0xff]
    %v1284 = vld [vmem:[#allocation13 + $0xd0] sm:$0xff]
    %v1285 = vld [vmem:[#allocation13 + $0xd8] sm:$0xff]
    %v1286 = vld [vmem:[#allocation13 + $0xe0] sm:$0xff]
    %v1287 = vld [vmem:[#allocation13 + $0xe8] sm:$0xff]
    %v1288 = vld [vmem:[#allocation13 + $0xf0] sm:$0xff]
    %v1289 = vld [vmem:[#allocation13 + $0xf8] sm:$0xff]
    %v1290 = vld [vmem:[#allocation13 + $0x100] sm:$0xff]
    %v1291 = vld [vmem:[#allocation13 + $0x108] sm:$0xff]
    %v1292 = vld [vmem:[#allocation13 + $0x110] sm:$0xff]
    %v1293 = vld [vmem:[#allocation13 + $0x118] sm:$0xff]
    %v1294 = vld [vmem:[#allocation13 + $0x120] sm:$0xff]
    %v1295 = vld [vmem:[#allocation13 + $0x128] sm:$0xff]
    %v1296 = vld [vmem:[#allocation13 + $0x130] sm:$0xff]
    %v1297 = vld [vmem:[#allocation13 + $0x138] sm:$0xff]
    %v1298 = vld [vmem:[#allocation13 + $0x140] sm:$0xff]
    %v1299 = vld [vmem:[#allocation13 + $0x148] sm:$0xff]
    %v1300 = vld [vmem:[#allocation13 + $0x150] sm:$0xff]
    %v1301 = vld [vmem:[#allocation13 + $0x158] sm:$0xff]
    %v1302 = vld [vmem:[#allocation13 + $0x160] sm:$0xff]
    %v1303 = vld [vmem:[#allocation13 + $0x168] sm:$0xff]
    %v1304 = vld [vmem:[#allocation13 + $0x170] sm:$0xff]
    %v1305 = vld [vmem:[#allocation13 + $0x178] sm:$0xff]
    %v1306 = vld [vmem:[#allocation13 + $0x180] sm:$0xff]
    %v1307 = vld [vmem:[#allocation13 + $0x188] sm:$0xff]
    %v1308 = vld [vmem:[#allocation13 + $0x190] sm:$0xff]
    %v1309 = vld [vmem:[#allocation13 + $0x198] sm:$0xff]
    %v1310 = vld [vmem:[#allocation13 + $0x1a0] sm:$0xff]
    %v1311 = vld [vmem:[#allocation13 + $0x1a8] sm:$0xff]
    %v1312 = vld [vmem:[#allocation13 + $0x1b0] sm:$0xff]
    %v1313 = vld [vmem:[#allocation13 + $0x1b8] sm:$0xff]
    %v1314 = vld [vmem:[#allocation13 + $0x1c0] sm:$0xff]
    %v1315 = vld [vmem:[#allocation13 + $0x1c8] sm:$0xff]
    %v1316 = vld [vmem:[#allocation13 + $0x1d0] sm:$0xff]
    %v1317 = vld [vmem:[#allocation13 + $0x1d8] sm:$0xff]
    %v1318 = vld [vmem:[#allocation13 + $0x1e0] sm:$0xff]
    %v1319 = vld [vmem:[#allocation13 + $0x1e8] sm:$0xff]
    %v1320 = vld [vmem:[#allocation13 + $0x1f0] sm:$0xff]
    %v1321 = vld [vmem:[#allocation13 + $0x1f8] sm:$0xff]
    %v1322 = vld [vmem:[%s9] sm:$0x3]
    %v1324 = vlaneseq
    %v1325 = vshrl.u32 %v1324, 7
    %v1326 = vsub.s32 0, %v1325
    %v1327 = vrot.slane %v1322, %v1326
    %v1328 = vlaneseq
    %v1329 = vshrl.u32 %v1328, 7
    %v1330 = vsub.s32 1, %v1329
    %v1331 = vrot.slane %v1322, %v1330
    %v1398 = vunpack.c.l.b16 %v1258
    %v1399 = vunpack.c.h.b16 %v1258
    %v1400 = vunpack.c.l.b16 %v1259
    %v1401 = vunpack.c.h.b16 %v1259
    %v1402 = vunpack.c.l.b16 %v1260
    %v1403 = vunpack.c.h.b16 %v1260
    %v1404 = vunpack.c.l.b16 %v1261
    %v1405 = vunpack.c.h.b16 %v1261
    %v1406 = vunpack.c.l.b16 %v1262
    %v1407 = vunpack.c.h.b16 %v1262
    %v1408 = vunpack.c.l.b16 %v1263
    %v1409 = vunpack.c.h.b16 %v1263
    %v1410 = vunpack.c.l.b16 %v1264
    %v1411 = vunpack.c.h.b16 %v1264
    %v1412 = vunpack.c.l.b16 %v1265
    %v1413 = vunpack.c.h.b16 %v1265
    %v1414 = vunpack.c.l.b16 %v1266
    %v1415 = vunpack.c.h.b16 %v1266
    %v1416 = vunpack.c.l.b16 %v1267
    %v1417 = vunpack.c.h.b16 %v1267
    %v1418 = vunpack.c.l.b16 %v1268
    %v1419 = vunpack.c.h.b16 %v1268
    %v1420 = vunpack.c.l.b16 %v1269
    %v1421 = vunpack.c.h.b16 %v1269
    %v1422 = vunpack.c.l.b16 %v1270
    %v1423 = vunpack.c.h.b16 %v1270
    %v1424 = vunpack.c.l.b16 %v1271
    %v1425 = vunpack.c.h.b16 %v1271
    %v1426 = vunpack.c.l.b16 %v1272
    %v1427 = vunpack.c.h.b16 %v1272
    %v1428 = vunpack.c.l.b16 %v1273
    %v1429 = vunpack.c.h.b16 %v1273
    %v1430 = vunpack.c.l.b16 %v1274
    %v1431 = vunpack.c.h.b16 %v1274
    %v1432 = vunpack.c.l.b16 %v1275
    %v1433 = vunpack.c.h.b16 %v1275
    %v1434 = vunpack.c.l.b16 %v1276
    %v1435 = vunpack.c.h.b16 %v1276
    %v1436 = vunpack.c.l.b16 %v1277
    %v1437 = vunpack.c.h.b16 %v1277
    %v1438 = vunpack.c.l.b16 %v1278
    %v1439 = vunpack.c.h.b16 %v1278
    %v1440 = vunpack.c.l.b16 %v1279
    %v1441 = vunpack.c.h.b16 %v1279
    %v1442 = vunpack.c.l.b16 %v1280
    %v1443 = vunpack.c.h.b16 %v1280
    %v1444 = vunpack.c.l.b16 %v1281
    %v1445 = vunpack.c.h.b16 %v1281
    %v1446 = vunpack.c.l.b16 %v1282
    %v1447 = vunpack.c.h.b16 %v1282
    %v1448 = vunpack.c.l.b16 %v1283
    %v1449 = vunpack.c.h.b16 %v1283
    %v1450 = vunpack.c.l.b16 %v1284
    %v1451 = vunpack.c.h.b16 %v1284
    %v1452 = vunpack.c.l.b16 %v1285
    %v1453 = vunpack.c.h.b16 %v1285
    %v1454 = vunpack.c.l.b16 %v1286
    %v1455 = vunpack.c.h.b16 %v1286
    %v1456 = vunpack.c.l.b16 %v1287
    %v1457 = vunpack.c.h.b16 %v1287
    %v1458 = vunpack.c.l.b16 %v1288
    %v1459 = vunpack.c.h.b16 %v1288
    %v1460 = vunpack.c.l.b16 %v1289
    %v1461 = vunpack.c.h.b16 %v1289
    %v1462 = vunpack.c.l.b16 %v1290
    %v1463 = vunpack.c.h.b16 %v1290
    %v1464 = vunpack.c.l.b16 %v1291
    %v1465 = vunpack.c.h.b16 %v1291
    %v1466 = vunpack.c.l.b16 %v1292
    %v1467 = vunpack.c.h.b16 %v1292
    %v1468 = vunpack.c.l.b16 %v1293
    %v1469 = vunpack.c.h.b16 %v1293
    %v1470 = vunpack.c.l.b16 %v1294
    %v1471 = vunpack.c.h.b16 %v1294
    %v1472 = vunpack.c.l.b16 %v1295
    %v1473 = vunpack.c.h.b16 %v1295
    %v1474 = vunpack.c.l.b16 %v1296
    %v1475 = vunpack.c.h.b16 %v1296
    %v1476 = vunpack.c.l.b16 %v1297
    %v1477 = vunpack.c.h.b16 %v1297
    %v1478 = vunpack.c.l.b16 %v1298
    %v1479 = vunpack.c.h.b16 %v1298
    %v1480 = vunpack.c.l.b16 %v1299
    %v1481 = vunpack.c.h.b16 %v1299
    %v1482 = vunpack.c.l.b16 %v1300
    %v1483 = vunpack.c.h.b16 %v1300
    %v1484 = vunpack.c.l.b16 %v1301
    %v1485 = vunpack.c.h.b16 %v1301
    %v1486 = vunpack.c.l.b16 %v1302
    %v1487 = vunpack.c.h.b16 %v1302
    %v1488 = vunpack.c.l.b16 %v1303
    %v1489 = vunpack.c.h.b16 %v1303
    %v1490 = vunpack.c.l.b16 %v1304
    %v1491 = vunpack.c.h.b16 %v1304
    %v1492 = vunpack.c.l.b16 %v1305
    %v1493 = vunpack.c.h.b16 %v1305
    %v1494 = vunpack.c.l.b16 %v1306
    %v1495 = vunpack.c.h.b16 %v1306
    %v1496 = vunpack.c.l.b16 %v1307
    %v1497 = vunpack.c.h.b16 %v1307
    %v1498 = vunpack.c.l.b16 %v1308
    %v1499 = vunpack.c.h.b16 %v1308
    %v1500 = vunpack.c.l.b16 %v1309
    %v1501 = vunpack.c.h.b16 %v1309
    %v1502 = vunpack.c.l.b16 %v1310
    %v1503 = vunpack.c.h.b16 %v1310
    %v1504 = vunpack.c.l.b16 %v1311
    %v1505 = vunpack.c.h.b16 %v1311
    %v1506 = vunpack.c.l.b16 %v1312
    %v1507 = vunpack.c.h.b16 %v1312
    %v1508 = vunpack.c.l.b16 %v1313
    %v1509 = vunpack.c.h.b16 %v1313
    %v1510 = vunpack.c.l.b16 %v1314
    %v1511 = vunpack.c.h.b16 %v1314
    %v1512 = vunpack.c.l.b16 %v1315
    %v1513 = vunpack.c.h.b16 %v1315
    %v1514 = vunpack.c.l.b16 %v1316
    %v1515 = vunpack.c.h.b16 %v1316
    %v1516 = vunpack.c.l.b16 %v1317
    %v1517 = vunpack.c.h.b16 %v1317
    %v1518 = vunpack.c.l.b16 %v1318
    %v1519 = vunpack.c.h.b16 %v1318
    %v1520 = vunpack.c.l.b16 %v1319
    %v1521 = vunpack.c.h.b16 %v1319
    %v1522 = vunpack.c.l.b16 %v1320
    %v1523 = vunpack.c.h.b16 %v1320
    %v1524 = vunpack.c.l.b16 %v1321
    %v1525 = vunpack.c.h.b16 %v1321
    %v1526 = vpack.c.b16 %v1400, %v1398
    %v1527 = vpack.c.b16 %v1401, %v1399
    %v1528 = vpack.c.b16 %v1404, %v1402
    %v1529 = vpack.c.b16 %v1405, %v1403
    %v1530 = vpack.c.b16 %v1408, %v1406
    %v1531 = vpack.c.b16 %v1409, %v1407
    %v1532 = vpack.c.b16 %v1412, %v1410
    %v1533 = vpack.c.b16 %v1413, %v1411
    %v1534 = vpack.c.b16 %v1416, %v1414
    %v1535 = vpack.c.b16 %v1417, %v1415
    %v1536 = vpack.c.b16 %v1420, %v1418
    %v1537 = vpack.c.b16 %v1421, %v1419
    %v1538 = vpack.c.b16 %v1424, %v1422
    %v1539 = vpack.c.b16 %v1425, %v1423
    %v1540 = vpack.c.b16 %v1428, %v1426
    %v1541 = vpack.c.b16 %v1429, %v1427
    %v1542 = vpack.c.b16 %v1432, %v1430
    %v1543 = vpack.c.b16 %v1433, %v1431
    %v1544 = vpack.c.b16 %v1436, %v1434
    %v1545 = vpack.c.b16 %v1437, %v1435
    %v1546 = vpack.c.b16 %v1440, %v1438
    %v1547 = vpack.c.b16 %v1441, %v1439
    %v1548 = vpack.c.b16 %v1444, %v1442
    %v1549 = vpack.c.b16 %v1445, %v1443
    %v1550 = vpack.c.b16 %v1448, %v1446
    %v1551 = vpack.c.b16 %v1449, %v1447
    %v1552 = vpack.c.b16 %v1452, %v1450
    %v1553 = vpack.c.b16 %v1453, %v1451
    %v1554 = vpack.c.b16 %v1456, %v1454
    %v1555 = vpack.c.b16 %v1457, %v1455
    %v1556 = vpack.c.b16 %v1460, %v1458
    %v1557 = vpack.c.b16 %v1461, %v1459
    %v1558 = vpack.c.b16 %v1464, %v1462
    %v1559 = vpack.c.b16 %v1465, %v1463
    %v1560 = vpack.c.b16 %v1468, %v1466
    %v1561 = vpack.c.b16 %v1469, %v1467
    %v1562 = vpack.c.b16 %v1472, %v1470
    %v1563 = vpack.c.b16 %v1473, %v1471
    %v1564 = vpack.c.b16 %v1476, %v1474
    %v1565 = vpack.c.b16 %v1477, %v1475
    %v1566 = vpack.c.b16 %v1480, %v1478
    %v1567 = vpack.c.b16 %v1481, %v1479
    %v1568 = vpack.c.b16 %v1484, %v1482
    %v1569 = vpack.c.b16 %v1485, %v1483
    %v1570 = vpack.c.b16 %v1488, %v1486
    %v1571 = vpack.c.b16 %v1489, %v1487
    %v1572 = vpack.c.b16 %v1492, %v1490
    %v1573 = vpack.c.b16 %v1493, %v1491
    %v1574 = vpack.c.b16 %v1496, %v1494
    %v1575 = vpack.c.b16 %v1497, %v1495
    %v1576 = vpack.c.b16 %v1500, %v1498
    %v1577 = vpack.c.b16 %v1501, %v1499
    %v1578 = vpack.c.b16 %v1504, %v1502
    %v1579 = vpack.c.b16 %v1505, %v1503
    %v1580 = vpack.c.b16 %v1508, %v1506
    %v1581 = vpack.c.b16 %v1509, %v1507
    %v1582 = vpack.c.b16 %v1512, %v1510
    %v1583 = vpack.c.b16 %v1513, %v1511
    %v1584 = vpack.c.b16 %v1516, %v1514
    %v1585 = vpack.c.b16 %v1517, %v1515
    %v1586 = vpack.c.b16 %v1520, %v1518
    %v1587 = vpack.c.b16 %v1521, %v1519
    %v1588 = vpack.c.b16 %v1524, %v1522
    %v1589 = vpack.c.b16 %v1525, %v1523
    %1654 = vmatprep.subr.bf16.mxu0 %v1541
    %1655 = vmatpush1.bf16.msra.mxu0 %v1540
    %1656 = vmatprep.subr.bf16.mxu0 %v1539
    %1657 = vmatpush1.bf16.msra.mxu0 %v1538
    %1658 = vmatprep.subr.bf16.mxu0 %v1537
    %1659 = vmatpush1.bf16.msra.mxu0 %v1536
    %1660 = vmatprep.subr.bf16.mxu0 %v1535
    %1661 = vmatpush1.bf16.msra.mxu0 %v1534
    %1662 = vmatprep.subr.bf16.mxu0 %v1533
    %1663 = vmatpush1.bf16.msra.mxu0 %v1532
    %1664 = vmatprep.subr.bf16.mxu0 %v1531
    %1665 = vmatpush1.bf16.msra.mxu0 %v1530
    %1666 = vmatprep.subr.bf16.mxu0 %v1529
    %1667 = vmatpush1.bf16.msra.mxu0 %v1528
    %1668 = vmatprep.subr.bf16.mxu0 %v1527
    %1669 = vmatpush1.bf16.msra.mxu0 %v1526
    %1670 = vmatprep.subr.bf16.mxu0 %v1557
    %1671 = vmatpush2.bf16.msra.mxu0 %v1556
    %1672 = vmatprep.subr.bf16.mxu0 %v1555
    %1673 = vmatpush2.bf16.msra.mxu0 %v1554
    %1674 = vmatprep.subr.bf16.mxu0 %v1553
    %1675 = vmatpush2.bf16.msra.mxu0 %v1552
    %1676 = vmatprep.subr.bf16.mxu0 %v1551
    %1677 = vmatpush2.bf16.msra.mxu0 %v1550
    %1678 = vmatprep.subr.bf16.mxu0 %v1549
    %1679 = vmatpush2.bf16.msra.mxu0 %v1548
    %1680 = vmatprep.subr.bf16.mxu0 %v1547
    %1681 = vmatpush2.bf16.msra.mxu0 %v1546
    %1682 = vmatprep.subr.bf16.mxu0 %v1545
    %1683 = vmatpush2.bf16.msra.mxu0 %v1544
    %1684 = vmatprep.subr.bf16.mxu0 %v1543
    %1685 = vmatpush2.bf16.msra.mxu0 %v1542
    %1686 = vmatprep.mubr.bf16.mxu0 %v1255
    %1687 = vmatmul.mubr.bf16.gmra.mxu0 %v1254
    %v1688 = vpop.f32.mrf.mxu0
    %v1689 = vadd.f32 %v1327, %v1688
    %v1690 = vpop.f32.mrf.mxu0
    %v1691 = vadd.f32 %v1331, %v1690
    %v1692 = vpop.f32.mrf.mxu0
    %v1693 = vadd.f32 %v1327, %v1692
    %v1694 = vpop.f32.mrf.mxu0
    %v1695 = vadd.f32 %v1331, %v1694
    %1696 = vdwg.mxu0
    %1697 = vmatprep.subr.bf16.mxu0 %v1573
    %1698 = vmatpush1.bf16.msra.mxu0 %v1572
    %1699 = vmatprep.subr.bf16.mxu0 %v1571
    %1700 = vmatpush1.bf16.msra.mxu0 %v1570
    %1701 = vmatprep.subr.bf16.mxu0 %v1569
    %1702 = vmatpush1.bf16.msra.mxu0 %v1568
    %1703 = vmatprep.subr.bf16.mxu0 %v1567
    %1704 = vmatpush1.bf16.msra.mxu0 %v1566
    %1705 = vmatprep.subr.bf16.mxu0 %v1565
    %1706 = vmatpush1.bf16.msra.mxu0 %v1564
    %1707 = vmatprep.subr.bf16.mxu0 %v1563
    %1708 = vmatpush1.bf16.msra.mxu0 %v1562
    %1709 = vmatprep.subr.bf16.mxu0 %v1561
    %1710 = vmatpush1.bf16.msra.mxu0 %v1560
    %1711 = vmatprep.subr.bf16.mxu0 %v1559
    %1712 = vmatpush1.bf16.msra.mxu0 %v1558
    %1713 = vmatprep.subr.bf16.mxu0 %v1589
    %1714 = vmatpush2.bf16.msra.mxu0 %v1588
    %1715 = vmatprep.subr.bf16.mxu0 %v1587
    %1716 = vmatpush2.bf16.msra.mxu0 %v1586
    %1717 = vmatprep.subr.bf16.mxu0 %v1585
    %1718 = vmatpush2.bf16.msra.mxu0 %v1584
    %1719 = vmatprep.subr.bf16.mxu0 %v1583
    %1720 = vmatpush2.bf16.msra.mxu0 %v1582
    %1721 = vmatprep.subr.bf16.mxu0 %v1581
    %1722 = vmatpush2.bf16.msra.mxu0 %v1580
    %1723 = vmatprep.subr.bf16.mxu0 %v1579
    %1724 = vmatpush2.bf16.msra.mxu0 %v1578
    %1725 = vmatprep.subr.bf16.mxu0 %v1577
    %1726 = vmatpush2.bf16.msra.mxu0 %v1576
    %1727 = vmatprep.subr.bf16.mxu0 %v1575
    %1728 = vmatpush2.bf16.msra.mxu0 %v1574
    %1729 = vmatprep.mubr.bf16.mxu0 %v1257
    %1730 = vmatmul.mubr.bf16.gmra.mxu0 %v1256
    %v1731 = vpop.f32.mrf.mxu0
    %v1732 = vadd.f32 %v1689, %v1731
    %v1733 = vpop.f32.mrf.mxu0
    %v1734 = vadd.f32 %v1691, %v1733
    %v1735 = vpop.f32.mrf.mxu0
    %v1736 = vadd.f32 %v1693, %v1735
    %v1737 = vpop.f32.mrf.mxu0
    %v1738 = vadd.f32 %v1695, %v1737
    %1739 = vdwg.mxu0
    %v1740 = vxor.u32 %v1732, 2147483648
    %v1741 = vxor.u32 %v1734, 2147483648
    %v1742 = vxor.u32 %v1736, 2147483648
    %v1743 = vxor.u32 %v1738, 2147483648
    %v1744 = vmul.f32 %v1740, 1.442695
    %v1745 = vpow.pop %v1744
    %v1746 = vmul.f32 %v1741, 1.442695
    %v1747 = vpow.pop %v1746
    %v1748 = vmul.f32 %v1742, 1.442695
    %v1749 = vpow.pop %v1748
    %v1750 = vmul.f32 %v1743, 1.442695
    %v1751 = vpow.pop %v1750
    %v1752 = vadd.f32 %v1745, 1.0
    %v1753 = vadd.f32 %v1747, 1.0
    %v1754 = vadd.f32 %v1749, 1.0
    %v1755 = vadd.f32 %v1751, 1.0
    %v1756 = vrcp.pop %v1752
    %v1757 = vmul.f32 1.0, %v1756
    %v1758 = vrcp.pop %v1753
    %v1759 = vmul.f32 1.0, %v1758
    %v1760 = vrcp.pop %v1754
    %v1761 = vmul.f32 1.0, %v1760
    %v1762 = vrcp.pop %v1755
    %v1763 = vmul.f32 1.0, %v1762
    %1764 = vst [vmem:[#allocation14] sm:$0xff] %v1757
    %1765 = vst [vmem:[#allocation14 + $0x8] sm:$0xff] %v1759
    %1766 = vst [vmem:[#allocation14 + $0x10] sm:$0xff] %v1761
    %1767 = vst [vmem:[#allocation14 + $0x18] sm:$0xff] %v1763
    %1768 = vst [vmem:[#allocation15] sm:$0xff] %v923
    %1769 = vst [vmem:[#allocation15 + $0x8] sm:$0xff] %v929
    // Predicated region
    $region70: #{tpu_custom_call.1} parent=1 // pred_check
      _
    $region71: #{tpu_custom_call.1} parent=1 // pred_check_branch
      %1771 = sbr.rel (0) target = $region73
    $region72: #{tpu_custom_call.1} parent=1 // pred_region
      %s1773 = ssub.s32 512, 512
      %1774 = vsyncadd [#allocation4], %s1773
      %s1775 = sshll.u32 [#allocation14], 4
      %s1776 = int_to_ptr.vmem [resolvable:$true] %s1775
      %1781 = dma.vmem_to_hbm [thread:$0]  %s1776, 512, %s10, [#allocation4], 256, 256, 16
    $region73: #{tpu_custom_call.1} parent=1 // pred_fallthru
      _
    // Predicated region
    $region74: #{tpu_custom_call.1} parent=1 // pred_check
      _
    $region75: #{tpu_custom_call.1} parent=1 // pred_check_branch
      %1783 = sbr.rel (0) target = $region77
    $region76: #{tpu_custom_call.1} parent=1 // pred_region
      %s1785 = ssub.s32 256, 256
      %1786 = vsyncadd [#allocation16], %s1785
      %s1787 = sshll.u32 [#allocation15], 4
      %s1788 = int_to_ptr.vmem [resolvable:$true] %s1787
      %1793 = dma.vmem_to_hbm [thread:$0]  %s1788, 256, %s11, [#allocation16], 128, 128, 8
    $region77: #{tpu_custom_call.1} parent=1 // pred_fallthru
      _
    // Predicated region
    $region78: #{tpu_custom_call.1} parent=1 // pred_check
      _
    $region79: #{tpu_custom_call.1} parent=1 // pred_check_branch
      %1795 = sbr.rel (0) target = $region81
    $region80: #{tpu_custom_call.1} parent=1 // pred_region
      %1796 = dma.done [#allocation4], 512
    $region81: #{tpu_custom_call.1} parent=1 // pred_fallthru
      _
    // Predicated region
    $region82: #{tpu_custom_call.1} parent=1 // pred_check
      _
    $region83: #{tpu_custom_call.1} parent=1 // pred_check_branch
      %1798 = sbr.rel (0) target = $region85
    $region84: #{tpu_custom_call.1} parent=1 // pred_region
      %1799 = dma.done [#allocation16], 256
    $region85: #{tpu_custom_call.1} parent=1 // pred_fallthru
      _
    %1800 = vsyncpa [#allocation3], 1
    %1801 = vsyncpa [#allocation6], 1
    %1802 = vsyncpa [#allocation9], 1
    %1803 = vsyncpa [#allocation12], 1
    %1804 = vsyncpa [#allocation4], 1
    %1805 = vsyncpa [#allocation16], 1

</llo_original>
